<compile_context>
chip_gen: v5e
topology: v5e:2x2
jax: 0.10.0
libtpu: 0.0.40
codegen_flags: <defaults>
</compile_context>

<pallas_src>
import functools

import jax
import jax.numpy as jnp
from jax import lax
from jax.experimental import pallas as pl
from jax.experimental.pallas import tpu as pltpu


def _down_block_kernel(alphas_ref, xsp_ref, w1_ref, b1_ref, w2_ref, b2_ref,
                       o_ref, hp_ref, *, ho, wo, use_bf16):
    """Fused PReLU -> conv1(3x3,s2,p1) -> PReLU -> conv2(3x3,s1,p1) for one image.

    xsp_ref : (1, (ho+2)*(wo+2), 4*Cin)  space-to-depth input, zero-padded ring,
              flattened padded spatial (row-major) so taps are contiguous slices.
    w1_ref  : (4, 4*Cin, Cout1)  conv1 re-expressed as a 2x2 conv over s2d channels.
    w2_ref  : (9, Cout2, Cout1)  conv2 taps, pre-transposed for the (Cout2, M) GEMM.
    o_ref   : (1, Cout2, (ho+2)*(wo+2))  NCHW output on the padded grid.
    hp_ref  : VMEM scratch ((ho+2)*(wo+2), Cout1) holding the padded intermediate.
    """
    wp = wo + 2
    n_rows = (ho + 2) * wp                 # padded flat spatial size
    span = (ho - 1) * wp + wo              # contiguous span covering all interior pixels
    cdt = jnp.bfloat16 if use_bf16 else jnp.float32

    a1 = alphas_ref[0]
    a2 = alphas_ref[1]

    # ---- PReLU #1, applied once per element (PReLU(0)=0 keeps the zero padding exact)
    xp = xsp_ref[0]                                        # (n_rows, 4*Cin) f32
    xp = jnp.where(xp >= 0, xp, a1 * xp).astype(cdt)

    # interior-column mask over the flat span [wp+1, wp+1+span): columns 1..wo are real
    col = (lax.broadcasted_iota(jnp.int32, (span, 1), 0) + (wp + 1)) % wp
    interior = jnp.logical_and(col >= 1, col <= wo)

    # ---- conv1: 3x3 stride-2 pad-1 == 2x2 conv over space-to-depth channels
    #      -> 4 contiguous-slice GEMMs on the MXU, f32 accumulation.
    cout1 = w1_ref.shape[2]
    acc1 = jnp.zeros((span, cout1), jnp.float32)
    for t in range(4):
        u, v = divmod(t, 2)
        start = u * wp + v
        tap = xp[start:start + span, :]                    # (span, 4*Cin)
        acc1 = acc1 + jnp.dot(tap, w1_ref[t].astype(cdt),
                              preferred_element_type=jnp.float32)
    h = acc1 + b1_ref[...]                                 # bias (1, Cout1) broadcast
    h = jnp.where(h >= 0, h, a2 * h)                       # PReLU #2
    h = jnp.where(interior, h, 0.0)                        # zero the pad columns

    # stage the padded intermediate in VMEM (no HBM round-trip between the layers)
    hp_ref[...] = jnp.zeros((n_rows, cout1), jnp.float32)
    hp_ref[wp + 1:wp + 1 + span, :] = h
    hpv = hp_ref[...].astype(cdt)

    # ---- conv2: 3x3 stride-1 pad-1 -> 9 contiguous-slice GEMMs, accumulated directly
    #      in transposed (Cout2, spatial) form so the output store is lane-dense.
    cout2 = w2_ref.shape[1]
    acc2 = jnp.zeros((cout2, span), jnp.float32)
    for t in range(9):
        kh, kw = divmod(t, 3)
        start = kh * wp + kw
        tap = hpv[start:start + span, :]                   # (span, Cout1)
        acc2 = acc2 + lax.dot_general(
            w2_ref[t].astype(cdt), tap,
            (((1,), (1,)), ((), ())),                      # contract Cout1 dims
            preferred_element_type=jnp.float32)

    o_ref[0] = jnp.zeros((cout2, n_rows), jnp.float32)
    o_ref[0, :, wp + 1:wp + 1 + span] = acc2 + b2_ref[...]  # bias (Cout2, 1) broadcast


def downsampling_block(x_nchw, params, *, use_bf16=False):
    """Forward pass of DownSamplingBlock. Input/output NCHW float32."""
    x = jnp.asarray(x_nchw, jnp.float32)
    n, cin, h, w = x.shape
    assert h % 2 == 0 and w % 2 == 0, "space-to-depth path assumes even H, W"
    ho, wo = h // 2, w // 2
    hp, wp = ho + 2, wo + 2
    c4 = 4 * cin

    w1 = jnp.asarray(params["w1"], jnp.float32)
    b1 = jnp.asarray(params["b1"], jnp.float32)
    w2 = jnp.asarray(params["w2"], jnp.float32)
    b2 = jnp.asarray(params["b2"], jnp.float32)
    cout1, cout2 = w1.shape[0], w2.shape[0]

    # ---- glue (pure layout, ~1x input bytes): NCHW -> NHWC -> space-to-depth ->
    #      zero-pad ring -> flatten padded spatial.
    xs = jnp.transpose(x, (0, 2, 3, 1))                            # (N,H,W,Cin)
    xs = xs.reshape(n, ho, 2, wo, 2, cin)
    xs = jnp.transpose(xs, (0, 1, 3, 2, 4, 5)).reshape(n, ho, wo, c4)
    xs = jnp.pad(xs, ((0, 0), (1, 1), (1, 1), (0, 0)))             # (N,ho+2,wo+2,4Cin)
    xs = xs.reshape(n, hp * wp, c4)

    # conv1 weights re-expressed as a 2x2 conv over the space-to-depth channels.
    w1p = jnp.pad(w1, ((0, 0), (0, 0), (1, 0), (1, 0)))            # (Cout1,Cin,4,4)
    w1s = w1p.reshape(cout1, cin, 2, 2, 2, 2)                      # (cout,cin,u,pr,v,pc)
    w1s = jnp.transpose(w1s, (2, 4, 3, 5, 1, 0)).reshape(4, c4, cout1)

    # conv2 weights as 9 (Cout2, Cout1) taps for the transposed GEMM.
    w2t = jnp.transpose(w2, (2, 3, 0, 1)).reshape(9, cout2, cout1)

    alphas = jnp.stack([jnp.asarray(params["alpha1"], jnp.float32).reshape(()),
                        jnp.asarray(params["alpha2"], jnp.float32).reshape(())])

    kernel = functools.partial(_down_block_kernel, ho=ho, wo=wo, use_bf16=use_bf16)

    out = pl.pallas_call(
        kernel,
        out_shape=jax.ShapeDtypeStruct((n, cout2, hp * wp), jnp.float32),
        grid=(n,),
        in_specs=[
            pl.BlockSpec(memory_space=pltpu.MemorySpace.SMEM),        # alphas (2,)
            pl.BlockSpec((1, hp * wp, c4), lambda b: (b, 0, 0)),      # s2d input (per image)
            pl.BlockSpec((4, c4, cout1), lambda b: (0, 0, 0)),        # conv1 taps (resident)
            pl.BlockSpec((1, cout1), lambda b: (0, 0)),               # bias1 (resident)
            pl.BlockSpec((9, cout2, cout1), lambda b: (0, 0, 0)),     # conv2 taps (resident)
            pl.BlockSpec((cout2, 1), lambda b: (0, 0)),               # bias2 (resident)
        ],
        out_specs=pl.BlockSpec((1, cout2, hp * wp), lambda b: (b, 0, 0)),
        scratch_shapes=[pltpu.VMEM((hp * wp, cout1), jnp.float32)],
        compiler_params=pltpu.CompilerParams(
            dimension_semantics=("parallel",),
            vmem_limit_bytes=32 * 1024 * 1024,
        ),
    )(alphas, xs, w1s, b1.reshape(1, cout1), w2t, b2.reshape(cout2, 1))

    # Kernel already emits NCHW on the padded grid; strip the pad ring (cheap slice).
    return out.reshape(n, cout2, hp, wp)[:, :, 1:ho + 1, 1:wo + 1]


def init_params(ch_in, ch_out, key):
    k1, k2, k3, k4 = jax.random.split(key, 4)
    # PyTorch defaults: PReLU single parameter = 0.25; conv init bound = 1/sqrt(fan_in).
    bound1 = 1.0 / (ch_in * 9) ** 0.5
    bound2 = 1.0 / (ch_out * 9) ** 0.5
    return {
        "alpha1": jnp.float32(0.25),
        "w1": jax.random.uniform(k1, (ch_out, ch_in, 3, 3), jnp.float32, -bound1, bound1),
        "b1": jax.random.uniform(k2, (ch_out,), jnp.float32, -bound1, bound1),
        "alpha2": jnp.float32(0.25),
        "w2": jax.random.uniform(k3, (ch_out, ch_out, 3, 3), jnp.float32, -bound2, bound2),
        "b2": jax.random.uniform(k4, (ch_out,), jnp.float32, -bound2, bound2),
    }


def _reference_forward(x_nchw, params):
    """Pure-JAX reference matching the PyTorch module exactly (sanity check)."""
    def prelu(x, a):
        return jnp.where(x >= 0, x, a * x)
    dn = ("NCHW", "OIHW", "NCHW")
    y = prelu(x_nchw, params["alpha1"])
    y = lax.conv_general_dilated(y, params["w1"], (2, 2), ((1, 1), (1, 1)),
                                 dimension_numbers=dn)
    y = y + params["b1"].reshape(1, -1, 1, 1)
    y = prelu(y, params["alpha2"])
    y = lax.conv_general_dilated(y, params["w2"], (1, 1), ((1, 1), (1, 1)),
                                 dimension_numbers=dn)
    y = y + params["b2"].reshape(1, -1, 1, 1)
    return y


if __name__ == "__main__":
    key = jax.random.PRNGKey(0)
    kx, kp = jax.random.split(key)
    N, ch_in, ch_out, H, W = 2, 4, 8, 16, 16
    x = jax.random.normal(kx, (N, ch_in, H, W), jnp.float32)   # NCHW like PyTorch
    params = init_params(ch_in, ch_out, kp)

    out = jax.block_until_ready(downsampling_block(x, params))
    assert out.shape == (N, ch_out, H // 2, W // 2), out.shape

    ref = jax.block_until_ready(_reference_forward(x, params))
    assert jnp.allclose(out, ref, rtol=1e-5, atol=1e-5), float(jnp.abs(out - ref).max())

    print("KERNEL_OK")
</pallas_src>

<mosaic_0001>
module attributes {stable_mosaic.version = 11 : i64} {
  func.func @_down_block_kernel(%arg0: i32, %arg1: memref<2xf32, #tpu.memory_space<smem>>, %arg2: memref<1x100x16xf32, #tpu.memory_space<vmem>>, %arg3: memref<4x16x8xf32, #tpu.memory_space<vmem>>, %arg4: memref<1x8xf32, #tpu.memory_space<vmem>>, %arg5: memref<9x8x8xf32, #tpu.memory_space<vmem>>, %arg6: memref<8x1xf32, #tpu.memory_space<vmem>>, %arg7: memref<1x8x100xf32, #tpu.memory_space<vmem>>, %arg8: memref<100x8xf32, #tpu.memory_space<vmem>>) attributes {dimension_semantics = [#tpu.dimension_semantics<parallel>], iteration_bounds = array<i64: 2>, scalar_prefetch = 0 : i64, scratch_operands = 1 : i64, tpu.core_type = #tpu.core_type<tc>, window_params = [{transform_indices = @transform_0, window_bounds = array<i64: 2>}, {transform_indices = @transform_1, window_bounds = array<i64: 1, 100, 16>}, {pipeline_mode = #tpu.pipeline_mode<synchronous>, transform_indices = @transform_2, window_bounds = array<i64: 4, 16, 8>}, {pipeline_mode = #tpu.pipeline_mode<synchronous>, transform_indices = @transform_3, window_bounds = array<i64: 1, 8>}, {pipeline_mode = #tpu.pipeline_mode<synchronous>, transform_indices = @transform_4, window_bounds = array<i64: 9, 8, 8>}, {pipeline_mode = #tpu.pipeline_mode<synchronous>, transform_indices = @transform_5, window_bounds = array<i64: 8, 1>}, {transform_indices = @transform_6, window_bounds = array<i64: 1, 8, 100>}]} {
    %c0 = arith.constant 0 : index
    %0 = memref.load %arg1[%c0] : memref<2xf32, #tpu.memory_space<smem>>
    %c1 = arith.constant 1 : index
    %1 = memref.load %arg1[%c1] : memref<2xf32, #tpu.memory_space<smem>>
    %c0_0 = arith.constant 0 : index
    %c0_1 = arith.constant 0 : index
    %c0_2 = arith.constant 0 : index
    %2 = vector.load %arg2[%c0_0, %c0_1, %c0_2] : memref<1x100x16xf32, #tpu.memory_space<vmem>>, vector<1x100x16xf32>
    %3 = vector.shape_cast %2 : vector<1x100x16xf32> to vector<100x16xf32>
    %cst = arith.constant 0.000000e+00 : f32
    %4 = vector.broadcast %cst : f32 to vector<100x16xf32>
    %5 = arith.cmpf oge, %3, %4 : vector<100x16xf32>
    %6 = vector.broadcast %0 : f32 to vector<100x16xf32>
    %7 = arith.mulf %6, %3 : vector<100x16xf32>
    %8 = arith.select %5, %3, %7 : vector<100x16xi1>, vector<100x16xf32>
    %9 = tpu.iota {dimensions = array<i32: 0>} : vector<78x1xi32>
    %c11_i32 = arith.constant 11 : i32
    %10 = vector.broadcast %c11_i32 : i32 to vector<78x1xi32>
    %11 = arith.addi %9, %10 : vector<78x1xi32>
    %c10_i32 = arith.constant 10 : i32
    %c0_i32 = arith.constant 0 : i32
    %12 = arith.cmpi eq, %c10_i32, %c0_i32 : i32
    %c1_i32 = arith.constant 1 : i32
    %13 = arith.select %12, %c1_i32, %c10_i32 : i32
    %14 = vector.broadcast %13 : i32 to vector<78x1xi32>
    %15 = arith.remsi %11, %14 : vector<78x1xi32>
    %c0_i32_3 = arith.constant 0 : i32
    %16 = vector.broadcast %c0_i32_3 : i32 to vector<78x1xi32>
    %17 = arith.cmpi ne, %15, %16 : vector<78x1xi32>
    %c0_i32_4 = arith.constant 0 : i32
    %18 = vector.broadcast %c0_i32_4 : i32 to vector<78x1xi32>
    %19 = arith.cmpi slt, %15, %18 : vector<78x1xi32>
    %c0_i32_5 = arith.constant 0 : i32
    %20 = arith.cmpi slt, %13, %c0_i32_5 : i32
    %21 = vector.broadcast %20 : i1 to vector<78x1xi1>
    %22 = vector.broadcast %21 : vector<78x1xi1> to vector<78x1xi1>
    %23 = arith.xori %19, %22 : vector<78x1xi1>
    %24 = arith.andi %23, %17 : vector<78x1xi1>
    %25 = vector.broadcast %13 : i32 to vector<78x1xi32>
    %26 = arith.addi %15, %25 : vector<78x1xi32>
    %27 = arith.select %24, %26, %15 : vector<78x1xi1>, vector<78x1xi32>
    %c1_i32_6 = arith.constant 1 : i32
    %28 = vector.broadcast %c1_i32_6 : i32 to vector<78x1xi32>
    %29 = arith.cmpi sge, %27, %28 : vector<78x1xi32>
    %c8_i32 = arith.constant 8 : i32
    %30 = vector.broadcast %c8_i32 : i32 to vector<78x1xi32>
    %31 = arith.cmpi sle, %27, %30 : vector<78x1xi32>
    %32 = arith.andi %29, %31 : vector<78x1xi1>
    %cst_7 = arith.constant 0.000000e+00 : f32
    %33 = vector.broadcast %cst_7 : f32 to vector<78x8xf32>
    %34 = vector.extract_strided_slice %8 {offsets = [0, 0], sizes = [78, 16], strides = [1, 1]} : vector<100x16xf32> to vector<78x16xf32>
    %c0_8 = arith.constant 0 : index
    %c0_9 = arith.constant 0 : index
    %c0_10 = arith.constant 0 : index
    %35 = vector.load %arg3[%c0_8, %c0_9, %c0_10] : memref<4x16x8xf32, #tpu.memory_space<vmem>>, vector<1x16x8xf32>
    %36 = vector.shape_cast %35 : vector<1x16x8xf32> to vector<16x8xf32>
    %cst_11 = arith.constant dense<0.000000e+00> : vector<78x8xf32>
    %37 = tpu.matmul %34, %36, %cst_11 {dimension_numbers = #tpu.dot_dimension_numbers<[1], [0], [0], [1], [0, 0, 1, 1], [], []>} : vector<78x16xf32>, vector<16x8xf32>, vector<78x8xf32> -> vector<78x8xf32>
    %38 = arith.addf %33, %37 : vector<78x8xf32>
    %39 = vector.extract_strided_slice %8 {offsets = [1, 0], sizes = [78, 16], strides = [1, 1]} : vector<100x16xf32> to vector<78x16xf32>
    %c1_12 = arith.constant 1 : index
    %c0_13 = arith.constant 0 : index
    %c0_14 = arith.constant 0 : index
    %40 = vector.load %arg3[%c1_12, %c0_13, %c0_14] : memref<4x16x8xf32, #tpu.memory_space<vmem>>, vector<1x16x8xf32>
    %41 = vector.shape_cast %40 : vector<1x16x8xf32> to vector<16x8xf32>
    %cst_15 = arith.constant dense<0.000000e+00> : vector<78x8xf32>
    %42 = tpu.matmul %39, %41, %cst_15 {dimension_numbers = #tpu.dot_dimension_numbers<[1], [0], [0], [1], [0, 0, 1, 1], [], []>} : vector<78x16xf32>, vector<16x8xf32>, vector<78x8xf32> -> vector<78x8xf32>
    %43 = arith.addf %38, %42 : vector<78x8xf32>
    %44 = vector.extract_strided_slice %8 {offsets = [10, 0], sizes = [78, 16], strides = [1, 1]} : vector<100x16xf32> to vector<78x16xf32>
    %c2 = arith.constant 2 : index
    %c0_16 = arith.constant 0 : index
    %c0_17 = arith.constant 0 : index
    %45 = vector.load %arg3[%c2, %c0_16, %c0_17] : memref<4x16x8xf32, #tpu.memory_space<vmem>>, vector<1x16x8xf32>
    %46 = vector.shape_cast %45 : vector<1x16x8xf32> to vector<16x8xf32>
    %cst_18 = arith.constant dense<0.000000e+00> : vector<78x8xf32>
    %47 = tpu.matmul %44, %46, %cst_18 {dimension_numbers = #tpu.dot_dimension_numbers<[1], [0], [0], [1], [0, 0, 1, 1], [], []>} : vector<78x16xf32>, vector<16x8xf32>, vector<78x8xf32> -> vector<78x8xf32>
    %48 = arith.addf %43, %47 : vector<78x8xf32>
    %49 = vector.extract_strided_slice %8 {offsets = [11, 0], sizes = [78, 16], strides = [1, 1]} : vector<100x16xf32> to vector<78x16xf32>
    %c3 = arith.constant 3 : index
    %c0_19 = arith.constant 0 : index
    %c0_20 = arith.constant 0 : index
    %50 = vector.load %arg3[%c3, %c0_19, %c0_20] : memref<4x16x8xf32, #tpu.memory_space<vmem>>, vector<1x16x8xf32>
    %51 = vector.shape_cast %50 : vector<1x16x8xf32> to vector<16x8xf32>
    %cst_21 = arith.constant dense<0.000000e+00> : vector<78x8xf32>
    %52 = tpu.matmul %49, %51, %cst_21 {dimension_numbers = #tpu.dot_dimension_numbers<[1], [0], [0], [1], [0, 0, 1, 1], [], []>} : vector<78x16xf32>, vector<16x8xf32>, vector<78x8xf32> -> vector<78x8xf32>
    %53 = arith.addf %48, %52 : vector<78x8xf32>
    %c0_22 = arith.constant 0 : index
    %c0_23 = arith.constant 0 : index
    %54 = vector.load %arg4[%c0_22, %c0_23] : memref<1x8xf32, #tpu.memory_space<vmem>>, vector<1x8xf32>
    %55 = vector.broadcast %54 : vector<1x8xf32> to vector<78x8xf32>
    %56 = arith.addf %53, %55 : vector<78x8xf32>
    %cst_24 = arith.constant 0.000000e+00 : f32
    %57 = vector.broadcast %cst_24 : f32 to vector<78x8xf32>
    %58 = arith.cmpf oge, %56, %57 : vector<78x8xf32>
    %59 = vector.broadcast %1 : f32 to vector<78x8xf32>
    %60 = arith.mulf %59, %56 : vector<78x8xf32>
    %61 = arith.select %58, %56, %60 : vector<78x8xi1>, vector<78x8xf32>
    %cst_25 = arith.constant 0.000000e+00 : f32
    %62 = vector.shape_cast %32 : vector<78x1xi1> to vector<78x1xi1>
    %63 = vector.broadcast %62 : vector<78x1xi1> to vector<78x8xi1>
    %64 = vector.broadcast %cst_25 : f32 to vector<78x8xf32>
    %65 = arith.select %63, %61, %64 : vector<78x8xi1>, vector<78x8xf32>
    %cst_26 = arith.constant 0.000000e+00 : f32
    %66 = vector.broadcast %cst_26 : f32 to vector<100x8xf32>
    %c0_27 = arith.constant 0 : index
    %c0_28 = arith.constant 0 : index
    %67 = vector.load %arg8[%c0_27, %c0_28] : memref<100x8xf32, #tpu.memory_space<vmem>>, vector<100x8xf32>
    tpu.vector_store %arg8[%c0_27, %c0_28], %66 {strides = array<i32>} : memref<100x8xf32, #tpu.memory_space<vmem>>, vector<100x8xf32>,
    %c11 = arith.constant 11 : index
    %c0_29 = arith.constant 0 : index
    %68 = vector.load %arg8[%c11, %c0_29] : memref<100x8xf32, #tpu.memory_space<vmem>>, vector<78x8xf32>
    tpu.vector_store %arg8[%c11, %c0_29], %65 {strides = array<i32>} : memref<100x8xf32, #tpu.memory_space<vmem>>, vector<78x8xf32>,
    %c0_30 = arith.constant 0 : index
    %c0_31 = arith.constant 0 : index
    %69 = vector.load %arg8[%c0_30, %c0_31] : memref<100x8xf32, #tpu.memory_space<vmem>>, vector<100x8xf32>
    %cst_32 = arith.constant 0.000000e+00 : f32
    %70 = vector.broadcast %cst_32 : f32 to vector<8x78xf32>
    %71 = vector.extract_strided_slice %69 {offsets = [0, 0], sizes = [78, 8], strides = [1, 1]} : vector<100x8xf32> to vector<78x8xf32>
    %c0_33 = arith.constant 0 : index
    %c0_34 = arith.constant 0 : index
    %c0_35 = arith.constant 0 : index
    %72 = vector.load %arg5[%c0_33, %c0_34, %c0_35] : memref<9x8x8xf32, #tpu.memory_space<vmem>>, vector<1x8x8xf32>
    %73 = vector.shape_cast %72 : vector<1x8x8xf32> to vector<8x8xf32>
    %cst_36 = arith.constant dense<0.000000e+00> : vector<8x78xf32>
    %74 = tpu.matmul %73, %71, %cst_36 {dimension_numbers = #tpu.dot_dimension_numbers<[1], [1], [0], [0], [0, 0, 1, 0], [], []>} : vector<8x8xf32>, vector<78x8xf32>, vector<8x78xf32> -> vector<8x78xf32>
    %75 = arith.addf %70, %74 : vector<8x78xf32>
    %76 = vector.extract_strided_slice %69 {offsets = [1, 0], sizes = [78, 8], strides = [1, 1]} : vector<100x8xf32> to vector<78x8xf32>
    %c1_37 = arith.constant 1 : index
    %c0_38 = arith.constant 0 : index
    %c0_39 = arith.constant 0 : index
    %77 = vector.load %arg5[%c1_37, %c0_38, %c0_39] : memref<9x8x8xf32, #tpu.memory_space<vmem>>, vector<1x8x8xf32>
    %78 = vector.shape_cast %77 : vector<1x8x8xf32> to vector<8x8xf32>
    %cst_40 = arith.constant dense<0.000000e+00> : vector<8x78xf32>
    %79 = tpu.matmul %78, %76, %cst_40 {dimension_numbers = #tpu.dot_dimension_numbers<[1], [1], [0], [0], [0, 0, 1, 0], [], []>} : vector<8x8xf32>, vector<78x8xf32>, vector<8x78xf32> -> vector<8x78xf32>
    %80 = arith.addf %75, %79 : vector<8x78xf32>
    %81 = vector.extract_strided_slice %69 {offsets = [2, 0], sizes = [78, 8], strides = [1, 1]} : vector<100x8xf32> to vector<78x8xf32>
    %c2_41 = arith.constant 2 : index
    %c0_42 = arith.constant 0 : index
    %c0_43 = arith.constant 0 : index
    %82 = vector.load %arg5[%c2_41, %c0_42, %c0_43] : memref<9x8x8xf32, #tpu.memory_space<vmem>>, vector<1x8x8xf32>
    %83 = vector.shape_cast %82 : vector<1x8x8xf32> to vector<8x8xf32>
    %cst_44 = arith.constant dense<0.000000e+00> : vector<8x78xf32>
    %84 = tpu.matmul %83, %81, %cst_44 {dimension_numbers = #tpu.dot_dimension_numbers<[1], [1], [0], [0], [0, 0, 1, 0], [], []>} : vector<8x8xf32>, vector<78x8xf32>, vector<8x78xf32> -> vector<8x78xf32>
    %85 = arith.addf %80, %84 : vector<8x78xf32>
    %86 = vector.extract_strided_slice %69 {offsets = [10, 0], sizes = [78, 8], strides = [1, 1]} : vector<100x8xf32> to vector<78x8xf32>
    %c3_45 = arith.constant 3 : index
    %c0_46 = arith.constant 0 : index
    %c0_47 = arith.constant 0 : index
    %87 = vector.load %arg5[%c3_45, %c0_46, %c0_47] : memref<9x8x8xf32, #tpu.memory_space<vmem>>, vector<1x8x8xf32>
    %88 = vector.shape_cast %87 : vector<1x8x8xf32> to vector<8x8xf32>
    %cst_48 = arith.constant dense<0.000000e+00> : vector<8x78xf32>
    %89 = tpu.matmul %88, %86, %cst_48 {dimension_numbers = #tpu.dot_dimension_numbers<[1], [1], [0], [0], [0, 0, 1, 0], [], []>} : vector<8x8xf32>, vector<78x8xf32>, vector<8x78xf32> -> vector<8x78xf32>
    %90 = arith.addf %85, %89 : vector<8x78xf32>
    %91 = vector.extract_strided_slice %69 {offsets = [11, 0], sizes = [78, 8], strides = [1, 1]} : vector<100x8xf32> to vector<78x8xf32>
    %c4 = arith.constant 4 : index
    %c0_49 = arith.constant 0 : index
    %c0_50 = arith.constant 0 : index
    %92 = vector.load %arg5[%c4, %c0_49, %c0_50] : memref<9x8x8xf32, #tpu.memory_space<vmem>>, vector<1x8x8xf32>
    %93 = vector.shape_cast %92 : vector<1x8x8xf32> to vector<8x8xf32>
    %cst_51 = arith.constant dense<0.000000e+00> : vector<8x78xf32>
    %94 = tpu.matmul %93, %91, %cst_51 {dimension_numbers = #tpu.dot_dimension_numbers<[1], [1], [0], [0], [0, 0, 1, 0], [], []>} : vector<8x8xf32>, vector<78x8xf32>, vector<8x78xf32> -> vector<8x78xf32>
    %95 = arith.addf %90, %94 : vector<8x78xf32>
    %96 = vector.extract_strided_slice %69 {offsets = [12, 0], sizes = [78, 8], strides = [1, 1]} : vector<100x8xf32> to vector<78x8xf32>
    %c5 = arith.constant 5 : index
    %c0_52 = arith.constant 0 : index
    %c0_53 = arith.constant 0 : index
    %97 = vector.load %arg5[%c5, %c0_52, %c0_53] : memref<9x8x8xf32, #tpu.memory_space<vmem>>, vector<1x8x8xf32>
    %98 = vector.shape_cast %97 : vector<1x8x8xf32> to vector<8x8xf32>
    %cst_54 = arith.constant dense<0.000000e+00> : vector<8x78xf32>
    %99 = tpu.matmul %98, %96, %cst_54 {dimension_numbers = #tpu.dot_dimension_numbers<[1], [1], [0], [0], [0, 0, 1, 0], [], []>} : vector<8x8xf32>, vector<78x8xf32>, vector<8x78xf32> -> vector<8x78xf32>
    %100 = arith.addf %95, %99 : vector<8x78xf32>
    %101 = vector.extract_strided_slice %69 {offsets = [20, 0], sizes = [78, 8], strides = [1, 1]} : vector<100x8xf32> to vector<78x8xf32>
    %c6 = arith.constant 6 : index
    %c0_55 = arith.constant 0 : index
    %c0_56 = arith.constant 0 : index
    %102 = vector.load %arg5[%c6, %c0_55, %c0_56] : memref<9x8x8xf32, #tpu.memory_space<vmem>>, vector<1x8x8xf32>
    %103 = vector.shape_cast %102 : vector<1x8x8xf32> to vector<8x8xf32>
    %cst_57 = arith.constant dense<0.000000e+00> : vector<8x78xf32>
    %104 = tpu.matmul %103, %101, %cst_57 {dimension_numbers = #tpu.dot_dimension_numbers<[1], [1], [0], [0], [0, 0, 1, 0], [], []>} : vector<8x8xf32>, vector<78x8xf32>, vector<8x78xf32> -> vector<8x78xf32>
    %105 = arith.addf %100, %104 : vector<8x78xf32>
    %106 = vector.extract_strided_slice %69 {offsets = [21, 0], sizes = [78, 8], strides = [1, 1]} : vector<100x8xf32> to vector<78x8xf32>
    %c7 = arith.constant 7 : index
    %c0_58 = arith.constant 0 : index
    %c0_59 = arith.constant 0 : index
    %107 = vector.load %arg5[%c7, %c0_58, %c0_59] : memref<9x8x8xf32, #tpu.memory_space<vmem>>, vector<1x8x8xf32>
    %108 = vector.shape_cast %107 : vector<1x8x8xf32> to vector<8x8xf32>
    %cst_60 = arith.constant dense<0.000000e+00> : vector<8x78xf32>
    %109 = tpu.matmul %108, %106, %cst_60 {dimension_numbers = #tpu.dot_dimension_numbers<[1], [1], [0], [0], [0, 0, 1, 0], [], []>} : vector<8x8xf32>, vector<78x8xf32>, vector<8x78xf32> -> vector<8x78xf32>
    %110 = arith.addf %105, %109 : vector<8x78xf32>
    %111 = vector.extract_strided_slice %69 {offsets = [22, 0], sizes = [78, 8], strides = [1, 1]} : vector<100x8xf32> to vector<78x8xf32>
    %c8 = arith.constant 8 : index
    %c0_61 = arith.constant 0 : index
    %c0_62 = arith.constant 0 : index
    %112 = vector.load %arg5[%c8, %c0_61, %c0_62] : memref<9x8x8xf32, #tpu.memory_space<vmem>>, vector<1x8x8xf32>
    %113 = vector.shape_cast %112 : vector<1x8x8xf32> to vector<8x8xf32>
    %cst_63 = arith.constant dense<0.000000e+00> : vector<8x78xf32>
    %114 = tpu.matmul %113, %111, %cst_63 {dimension_numbers = #tpu.dot_dimension_numbers<[1], [1], [0], [0], [0, 0, 1, 0], [], []>} : vector<8x8xf32>, vector<78x8xf32>, vector<8x78xf32> -> vector<8x78xf32>
    %115 = arith.addf %110, %114 : vector<8x78xf32>
    %cst_64 = arith.constant 0.000000e+00 : f32
    %116 = vector.broadcast %cst_64 : f32 to vector<8x100xf32>
    %c0_65 = arith.constant 0 : index
    %c0_66 = arith.constant 0 : index
    %c0_67 = arith.constant 0 : index
    %117 = vector.load %arg7[%c0_65, %c0_66, %c0_67] : memref<1x8x100xf32, #tpu.memory_space<vmem>>, vector<1x8x100xf32>
    %118 = vector.shape_cast %117 : vector<1x8x100xf32> to vector<8x100xf32>
    %119 = vector.shape_cast %116 : vector<8x100xf32> to vector<1x8x100xf32>
    tpu.vector_store %arg7[%c0_65, %c0_66, %c0_67], %119 {strides = array<i32>} : memref<1x8x100xf32, #tpu.memory_space<vmem>>, vector<1x8x100xf32>,
    %c0_68 = arith.constant 0 : index
    %c0_69 = arith.constant 0 : index
    %120 = vector.load %arg6[%c0_68, %c0_69] : memref<8x1xf32, #tpu.memory_space<vmem>>, vector<8x1xf32>
    %121 = vector.broadcast %120 : vector<8x1xf32> to vector<8x78xf32>
    %122 = arith.addf %115, %121 : vector<8x78xf32>
    %c0_70 = arith.constant 0 : index
    %c0_71 = arith.constant 0 : index
    %c11_72 = arith.constant 11 : index
    %123 = vector.load %arg7[%c0_70, %c0_71, %c11_72] : memref<1x8x100xf32, #tpu.memory_space<vmem>>, vector<1x8x78xf32>
    %124 = vector.shape_cast %123 : vector<1x8x78xf32> to vector<8x78xf32>
    %125 = vector.shape_cast %122 : vector<8x78xf32> to vector<1x8x78xf32>
    tpu.vector_store %arg7[%c0_70, %c0_71, %c11_72], %125 {strides = array<i32>} : memref<1x8x100xf32, #tpu.memory_space<vmem>>, vector<1x8x78xf32>,
    return
  }
  func.func @transform_0(%arg0: i32) -> i32 {
    %c0_i32 = arith.constant 0 : i32
    %c0_i32_0 = arith.constant 0 : i32
    return %c0_i32 : i32
  }
  func.func @transform_1(%arg0: i32) -> (i32, i32, i32) {
    %c0_i32 = arith.constant 0 : i32
    %c0_i32_0 = arith.constant 0 : i32
    %c0_i32_1 = arith.constant 0 : i32
    return %arg0, %c0_i32, %c0_i32_0 : i32, i32, i32
  }
  func.func @transform_2(%arg0: i32) -> (i32, i32, i32) {
    %c0_i32 = arith.constant 0 : i32
    %c0_i32_0 = arith.constant 0 : i32
    %c0_i32_1 = arith.constant 0 : i32
    %c0_i32_2 = arith.constant 0 : i32
    return %c0_i32, %c0_i32_0, %c0_i32_1 : i32, i32, i32
  }
  func.func @transform_3(%arg0: i32) -> (i32, i32) {
    %c0_i32 = arith.constant 0 : i32
    %c0_i32_0 = arith.constant 0 : i32
    %c0_i32_1 = arith.constant 0 : i32
    return %c0_i32, %c0_i32_0 : i32, i32
  }
  func.func @transform_4(%arg0: i32) -> (i32, i32, i32) {
    %c0_i32 = arith.constant 0 : i32
    %c0_i32_0 = arith.constant 0 : i32
    %c0_i32_1 = arith.constant 0 : i32
    %c0_i32_2 = arith.constant 0 : i32
    return %c0_i32, %c0_i32_0, %c0_i32_1 : i32, i32, i32
  }
  func.func @transform_5(%arg0: i32) -> (i32, i32) {
    %c0_i32 = arith.constant 0 : i32
    %c0_i32_0 = arith.constant 0 : i32
    %c0_i32_1 = arith.constant 0 : i32
    return %c0_i32, %c0_i32_0 : i32, i32
  }
  func.func @transform_6(%arg0: i32) -> (i32, i32, i32) {
    %c0_i32 = arith.constant 0 : i32
    %c0_i32_0 = arith.constant 0 : i32
    %c0_i32_1 = arith.constant 0 : i32
    return %arg0, %c0_i32, %c0_i32_0 : i32, i32, i32
  }
}

</mosaic_0001>

<llo_original>
// kernel: tpu_custom_call.1
$region0: #{tpu_custom_call.1}
  #allocation0 [shape = 'u32[]', space=smem, size = 0x4, offset = 0x4, fixed_abs, tag = 'smem constant byte address 0x4 - core index']
  #allocation1 [shape = 'u32[72,128]{1,0:T(1,128)}', space=vmem, size = 0x9000, scoped, tag = 'internal scratch']
  #allocation2 [shape = 'f32[100,8]{1,0:T(8,128)}', space=vmem, size = 0xd000, scoped, tag = 'scratch operand']
  %s0 = inlined_call_operand.vmem [shape: f32[2], index: 0, kind: input, shape index: {}]
  %s1 = inlined_call_operand.vmem [shape: f32[2,100,16], index: 1, kind: input, shape index: {}]
  %s2 = inlined_call_operand.vmem [shape: f32[4,16,8], index: 2, kind: input, shape index: {}]
  %s3 = inlined_call_operand.vmem [shape: f32[1,8], index: 3, kind: input, shape index: {}]
  %s4 = inlined_call_operand.vmem [shape: f32[9,8,8], index: 4, kind: input, shape index: {}]
  %s5 = inlined_call_operand.vmem [shape: f32[8,1], index: 5, kind: input, shape index: {}]
  %s6 = inlined_call_operand.hbm [shape: f32[2,8,100], index: 6, kind: output, shape index: {}]
  %s7 = sld [smem:[#allocation0]]
  $region61: #{tpu_custom_call.1} parent=0
    _
  %s9 = ssub.s32 1, %s7
  %s10 = scalar_select 0, %s9, %s7
  $region1: #{tpu_custom_call.1} parent=0
    #allocation3 [shape = 'u8[512]{0}', space=smem, size = 0x200, scoped, tag = 'input window, operand 0, single buffered']
    #allocation4 [shape = 's32[2]{0}', space=sflag, size = 0x8, scoped, tag = 'scoped memory for tpu_custom_call.1']
    #allocation5 [shape = 's32[2]{0}', space=sflag, size = 0x8, scoped, tag = 'scoped memory for tpu_custom_call.1']
    #allocation6 [shape = 'u8[8192]{0}', space=vmem, size = 0x2000, scoped, tag = 'output window, operand 0']
    %11 = vsyncpa [#allocation5], 0
    %12 = vsyncpa [#allocation4], 0
    %s13 = scalar_lea.sflag [#allocation4], 1
    %14 = vsyncpa %s13, 0
    loop: start=0, step=1, limit=4
    $region2: #{tpu_custom_call.1} parent=1 // loop_pre_header
      _
    $region3: #{tpu_custom_call.1} parent=1 // loop_header
      %s16 = sphi 0, %s20
      %p17 = scmp.ge.s32.totalorder %s16, 4
      %s24 = sphi 0, %s24
      %s26 = sphi 0, %s24
      %s27 = sphi 0, %s26
      %s41 = sphi 0, %s27
      %s47 = sphi 0, %s49
      %s50 = sphi 0, %s47
      %s51 = sphi 0, %s50
      %s67 = sphi 0, %s51
      %s71 = sphi 0, %s71
      %s73 = sphi 0, %s71
      %s74 = sphi 0, %s73
      %s88 = sphi 0, %s74
      %s92 = sphi 0, %s92
      %s94 = sphi 0, %s92
      %s95 = sphi 0, %s94
      %s109 = sphi 0, %s95
      %s113 = sphi 0, %s113
      %s115 = sphi 0, %s113
      %s116 = sphi 0, %s115
      %s130 = sphi 0, %s116
      %s134 = sphi 0, %s134
      %s136 = sphi 0, %s134
      %s137 = sphi 0, %s136
      %s151 = sphi 0, %s137
      %s157 = sphi 0, %s159
      %s160 = sphi 0, %s157
      %s161 = sphi 0, %s160
      %s177 = sphi 0, %s161
    $region4: #{tpu_custom_call.1} parent=1 // loop_header_branch
      %19 = sbr.rel (%p17) target = $region8
    $region5: #{tpu_custom_call.1} parent=1 // loop_body
      %s21 = ssub.s32 %s16, 1
      %s22 = ssub.s32 %s16, 2
      %s23 = sadd.s32 %s16, 1
      %s25 = sadd.s32 %s24, 1
      %p28 = scmp.eq.s32.totalorder %s16, 1
      %p29 = scmp.ne.s32.totalorder %s24, %s26
      %p30 = scmp.eq.s32.totalorder %s16, 0
      %p31 = por %p29, %p30
      %p32 = scmp.ne.s32.totalorder %s24, %s26
      %p33 = scmp.eq.s32.totalorder %s21, 1
      %p34 = por %p32, %p33
      %p35 = scmp.ne.s32.totalorder %s26, %s27
      %p36 = scmp.eq.s32.totalorder %s21, 0
      %p37 = por %p35, %p36
      %p38 = scmp.ne.s32.totalorder %s26, %s27
      %p39 = scmp.eq.s32.totalorder %s22, 1
      %p40 = por %p38, %p39
      %p42 = scmp.ne.s32.totalorder %s27, %s41
      %p43 = scmp.eq.s32.totalorder %s22, 0
      %p44 = por %p42, %p43
      %s45 = ssub.s32 %s16, %s23
      %p46 = scmp.eq.s32.totalorder %s45, 0
      %s48 = sadd.s32 %s47, 1
      %s49 = scalar_select %p46, %s47, %s48
      %p52 = pneg %p46
      %p53 = scmp.eq.s32.totalorder %s16, 1
      %p54 = por %p52, %p53
      %p55 = scmp.ne.s32.totalorder %s47, %s50
      %p56 = scmp.eq.s32.totalorder %s16, 0
      %p57 = por %p55, %p56
      %p58 = scmp.ne.s32.totalorder %s47, %s50
      %p59 = scmp.eq.s32.totalorder %s21, 1
      %p60 = por %p58, %p59
      %p61 = scmp.ne.s32.totalorder %s50, %s51
      %p62 = scmp.eq.s32.totalorder %s21, 0
      %p63 = por %p61, %p62
      %p64 = scmp.ne.s32.totalorder %s50, %s51
      %p65 = scmp.eq.s32.totalorder %s22, 1
      %p66 = por %p64, %p65
      %p68 = scmp.ne.s32.totalorder %s51, %s67
      %p69 = scmp.eq.s32.totalorder %s22, 0
      %p70 = por %p68, %p69
      %s72 = sadd.s32 %s71, 1
      %p75 = scmp.eq.s32.totalorder %s16, 1
      %p76 = scmp.ne.s32.totalorder %s71, %s73
      %p77 = scmp.eq.s32.totalorder %s16, 0
      %p78 = por %p76, %p77
      %p79 = scmp.ne.s32.totalorder %s71, %s73
      %p80 = scmp.eq.s32.totalorder %s21, 1
      %p81 = por %p79, %p80
      %p82 = scmp.ne.s32.totalorder %s73, %s74
      %p83 = scmp.eq.s32.totalorder %s21, 0
      %p84 = por %p82, %p83
      %p85 = scmp.ne.s32.totalorder %s73, %s74
      %p86 = scmp.eq.s32.totalorder %s22, 1
      %p87 = por %p85, %p86
      %p89 = scmp.ne.s32.totalorder %s74, %s88
      %p90 = scmp.eq.s32.totalorder %s22, 0
      %p91 = por %p89, %p90
      %s93 = sadd.s32 %s92, 1
      %p96 = scmp.eq.s32.totalorder %s16, 1
      %p97 = scmp.ne.s32.totalorder %s92, %s94
      %p98 = scmp.eq.s32.totalorder %s16, 0
      %p99 = por %p97, %p98
      %p100 = scmp.ne.s32.totalorder %s92, %s94
      %p101 = scmp.eq.s32.totalorder %s21, 1
      %p102 = por %p100, %p101
      %p103 = scmp.ne.s32.totalorder %s94, %s95
      %p104 = scmp.eq.s32.totalorder %s21, 0
      %p105 = por %p103, %p104
      %p106 = scmp.ne.s32.totalorder %s94, %s95
      %p107 = scmp.eq.s32.totalorder %s22, 1
      %p108 = por %p106, %p107
      %p110 = scmp.ne.s32.totalorder %s95, %s109
      %p111 = scmp.eq.s32.totalorder %s22, 0
      %p112 = por %p110, %p111
      %s114 = sadd.s32 %s113, 1
      %p117 = scmp.eq.s32.totalorder %s16, 1
      %p118 = scmp.ne.s32.totalorder %s113, %s115
      %p119 = scmp.eq.s32.totalorder %s16, 0
      %p120 = por %p118, %p119
      %p121 = scmp.ne.s32.totalorder %s113, %s115
      %p122 = scmp.eq.s32.totalorder %s21, 1
      %p123 = por %p121, %p122
      %p124 = scmp.ne.s32.totalorder %s115, %s116
      %p125 = scmp.eq.s32.totalorder %s21, 0
      %p126 = por %p124, %p125
      %p127 = scmp.ne.s32.totalorder %s115, %s116
      %p128 = scmp.eq.s32.totalorder %s22, 1
      %p129 = por %p127, %p128
      %p131 = scmp.ne.s32.totalorder %s116, %s130
      %p132 = scmp.eq.s32.totalorder %s22, 0
      %p133 = por %p131, %p132
      %s135 = sadd.s32 %s134, 1
      %p138 = scmp.eq.s32.totalorder %s16, 1
      %p139 = scmp.ne.s32.totalorder %s134, %s136
      %p140 = scmp.eq.s32.totalorder %s16, 0
      %p141 = por %p139, %p140
      %p142 = scmp.ne.s32.totalorder %s134, %s136
      %p143 = scmp.eq.s32.totalorder %s21, 1
      %p144 = por %p142, %p143
      %p145 = scmp.ne.s32.totalorder %s136, %s137
      %p146 = scmp.eq.s32.totalorder %s21, 0
      %p147 = por %p145, %p146
      %p148 = scmp.ne.s32.totalorder %s136, %s137
      %p149 = scmp.eq.s32.totalorder %s22, 1
      %p150 = por %p148, %p149
      %p152 = scmp.ne.s32.totalorder %s137, %s151
      %p153 = scmp.eq.s32.totalorder %s22, 0
      %p154 = por %p152, %p153
      %s155 = ssub.s32 %s16, %s23
      %p156 = scmp.eq.s32.totalorder %s155, 0
      %s158 = sadd.s32 %s157, 1
      %s159 = scalar_select %p156, %s157, %s158
      %p162 = pneg %p156
      %p163 = scmp.eq.s32.totalorder %s16, 1
      %p164 = por %p162, %p163
      %p165 = scmp.ne.s32.totalorder %s157, %s160
      %p166 = scmp.eq.s32.totalorder %s16, 0
      %p167 = por %p165, %p166
      %p168 = scmp.ne.s32.totalorder %s157, %s160
      %p169 = scmp.eq.s32.totalorder %s21, 1
      %p170 = por %p168, %p169
      %p171 = scmp.ne.s32.totalorder %s160, %s161
      %p172 = scmp.eq.s32.totalorder %s21, 0
      %p173 = por %p171, %p172
      %p174 = scmp.ne.s32.totalorder %s160, %s161
      %p175 = scmp.eq.s32.totalorder %s22, 1
      %p176 = por %p174, %p175
      %p178 = scmp.ne.s32.totalorder %s161, %s177
      %p179 = scmp.eq.s32.totalorder %s22, 0
      %p180 = por %p178, %p179
      %p181 = scmp.le.s32.totalorder 1, %s16
      %p182 = scmp.lt.s32.totalorder %s16, 3
      %p183 = pnand %p181, %p182
      %p184 = pneg %p183
      // Predicated region
      $region9: #{tpu_custom_call.1} parent=5 // pred_check
        _
      $region10: #{tpu_custom_call.1} parent=5 // pred_check_branch
        %186 = sbr.rel (%p183) target = $region12
      $region11: #{tpu_custom_call.1} parent=5 // pred_region
        %s187 = ssub.s32 %s16, 1
        // Predicated region
        $region13: #{tpu_custom_call.1} parent=11 // pred_check
          %p188 = pneg %p37
        $region14: #{tpu_custom_call.1} parent=11 // pred_check_branch
          %190 = sbr.rel (%p188) target = $region16
        $region15: #{tpu_custom_call.1} parent=11 // pred_region
          %192 = vsyncadd [#allocation5], 0
          %s194 = sshll.u32 %s0, 4
          %s195 = int_to_ptr.vmem [resolvable:$true] %s194
          %197 = dma.vmem_to_smem %s195, 16, [#allocation3], [#allocation5]
        $region16: #{tpu_custom_call.1} parent=11 // pred_fallthru
          _
        // Predicated region
        $region17: #{tpu_custom_call.1} parent=11 // pred_check
          %p198 = pneg %p84
        $region18: #{tpu_custom_call.1} parent=11 // pred_check_branch
          %200 = sbr.rel (%p198) target = $region20
        $region19: #{tpu_custom_call.1} parent=11 // pred_region
          _
        $region20: #{tpu_custom_call.1} parent=11 // pred_fallthru
          _
        // Predicated region
        $region21: #{tpu_custom_call.1} parent=11 // pred_check
          %p201 = pneg %p105
        $region22: #{tpu_custom_call.1} parent=11 // pred_check_branch
          %203 = sbr.rel (%p201) target = $region24
        $region23: #{tpu_custom_call.1} parent=11 // pred_region
          _
        $region24: #{tpu_custom_call.1} parent=11 // pred_fallthru
          _
        // Predicated region
        $region25: #{tpu_custom_call.1} parent=11 // pred_check
          %p204 = pneg %p126
        $region26: #{tpu_custom_call.1} parent=11 // pred_check_branch
          %206 = sbr.rel (%p204) target = $region28
        $region27: #{tpu_custom_call.1} parent=11 // pred_region
          _
        $region28: #{tpu_custom_call.1} parent=11 // pred_fallthru
          _
        // Predicated region
        $region29: #{tpu_custom_call.1} parent=11 // pred_check
          %p207 = pneg %p147
        $region30: #{tpu_custom_call.1} parent=11 // pred_check_branch
          %209 = sbr.rel (%p207) target = $region32
        $region31: #{tpu_custom_call.1} parent=11 // pred_region
          _
        $region32: #{tpu_custom_call.1} parent=11 // pred_fallthru
          _
      $region12: #{tpu_custom_call.1} parent=5 // pred_fallthru
        _
      %p210 = scmp.lt.s32.totalorder %s16, 2
      // Predicated region
      $region33: #{tpu_custom_call.1} parent=5 // pred_check
        %p211 = pneg %p210
      $region34: #{tpu_custom_call.1} parent=5 // pred_check_branch
        %213 = sbr.rel (%p211) target = $region36
      $region35: #{tpu_custom_call.1} parent=5 // pred_region
        // Predicated region
        $region37: #{tpu_custom_call.1} parent=35 // pred_check
          %p214 = pneg %p57
        $region38: #{tpu_custom_call.1} parent=35 // pred_check_branch
          %216 = sbr.rel (%p214) target = $region40
        $region39: #{tpu_custom_call.1} parent=35 // pred_region
          %p217 = scmp.lt.s32.totalorder %s16, 1
          %s218 = scalar_select %p217, %s16, 1
          %s219 = smul.addr %s218, 13
          %s220 = smul.addr %s219, 8
          %s221 = scalar_lea.vmem %s1, %s220
        $region40: #{tpu_custom_call.1} parent=35 // pred_fallthru
          _
      $region36: #{tpu_custom_call.1} parent=5 // pred_fallthru
        _
      %p222 = scmp.le.s32.totalorder 1, %s16
      %p223 = scmp.lt.s32.totalorder %s16, 3
      %p224 = pnand %p222, %p223
      %p225 = pneg %p224
      // Predicated region
      $region41: #{tpu_custom_call.1} parent=5 // pred_check
        _
      $region42: #{tpu_custom_call.1} parent=5 // pred_check_branch
        %227 = sbr.rel (%p224) target = $region44
      $region43: #{tpu_custom_call.1} parent=5 // pred_region
        %s228 = ssub.s32 %s16, 1
        // Predicated region
        $region45: #{tpu_custom_call.1} parent=43 // pred_check
          %p229 = pneg %p37
        $region46: #{tpu_custom_call.1} parent=43 // pred_check_branch
          %231 = sbr.rel (%p229) target = $region48
        $region47: #{tpu_custom_call.1} parent=43 // pred_region
          %233 = dma.done [#allocation5], 16
        $region48: #{tpu_custom_call.1} parent=43 // pred_fallthru
          _
        %234 = sfence
        %p235 = pneg %p37
        %p236 = pneg %p34
        %p237 = scmp.lt.s32.totalorder %s21, 1
        %s238 = scalar_select %p237, %s21, 1
        %s239 = smul.addr %s238, 13
        %s240 = smul.addr %s239, 8
        %s241 = scalar_lea.vmem %s1, %s240
        %p242 = pneg %p63
        %p243 = pneg %p60
        %p244 = pneg %p84
        %p245 = pneg %p81
        %p246 = pneg %p105
        %p247 = pneg %p102
        %p248 = pneg %p126
        %p249 = pneg %p123
        %p250 = pneg %p147
        %p251 = pneg %p144
        %p252 = pneg %p173
        %p253 = pneg %p170
        %s254 = sand.u32 %s160, 1
        %s255 = scalar_lea.sflag [#allocation4], %s254
        %s256 = sand.u32 %s160, 1
        %s257 = smul.addr %s256, 8
        %s258 = scalar_lea.vmem [#allocation6], %s257
        %p259 = scmp.lt.s32.totalorder %s21, 1
        %s260 = scalar_select %p259, %s21, 1
        %s261 = smul.addr %s260, 13
        %s262 = smul.addr %s261, 8
        %s263 = scalar_lea.vmem %s1, %s262
        %s264 = sld [smem:[#allocation3]]
        %s265 = sld [smem:[#allocation3 + $0x1]]
        %v266 = vld [vmem:[%s263] sm:$0xff]
        %v267 = vld [vmem:[%s263 + $0x8] sm:$0xff]
        %v268 = vld [vmem:[%s263 + $0x10] sm:$0xff]
        %v269 = vld [vmem:[%s263 + $0x18] sm:$0xff]
        %v270 = vld [vmem:[%s263 + $0x20] sm:$0xff]
        %v271 = vld [vmem:[%s263 + $0x28] sm:$0xff]
        %v272 = vld [vmem:[%s263 + $0x30] sm:$0xff]
        %v273 = vld [vmem:[%s263 + $0x38] sm:$0xff]
        %v274 = vld [vmem:[%s263 + $0x40] sm:$0xff]
        %v275 = vld [vmem:[%s263 + $0x48] sm:$0xff]
        %v276 = vld [vmem:[%s263 + $0x50] sm:$0xff]
        %v277 = vld [vmem:[%s263 + $0x58] sm:$0xff]
        %vm278 = vcmp.ge.f32.partialorder %v266, 0.0
        %vm279 = vcmp.ge.f32.partialorder %v267, 0.0
        %vm280 = vcmp.ge.f32.partialorder %v268, 0.0
        %vm281 = vcmp.ge.f32.partialorder %v269, 0.0
        %vm282 = vcmp.ge.f32.partialorder %v270, 0.0
        %vm283 = vcmp.ge.f32.partialorder %v271, 0.0
        %vm284 = vcmp.ge.f32.partialorder %v272, 0.0
        %vm285 = vcmp.ge.f32.partialorder %v273, 0.0
        %vm286 = vcmp.ge.f32.partialorder %v274, 0.0
        %vm287 = vcmp.ge.f32.partialorder %v275, 0.0
        %vm288 = vcmp.ge.f32.partialorder %v276, 0.0
        %vm289 = vcmp.ge.f32.partialorder %v277, 0.0
        %v290 = vstv %s264
        %v291 = vmul.f32 %v290, %v266
        %v292 = vmul.f32 %v290, %v267
        %v293 = vmul.f32 %v290, %v268
        %v294 = vmul.f32 %v290, %v269
        %v295 = vmul.f32 %v290, %v270
        %v296 = vmul.f32 %v290, %v271
        %v297 = vmul.f32 %v290, %v272
        %v298 = vmul.f32 %v290, %v273
        %v299 = vmul.f32 %v290, %v274
        %v300 = vmul.f32 %v290, %v275
        %v301 = vmul.f32 %v290, %v276
        %v302 = vmul.f32 %v290, %v277
        %v303 = vsel %vm278, %v266, %v291
        %v304 = vsel %vm279, %v267, %v292
        %v305 = vsel %vm280, %v268, %v293
        %v306 = vsel %vm281, %v269, %v294
        %v307 = vsel %vm282, %v270, %v295
        %v308 = vsel %vm283, %v271, %v296
        %v309 = vsel %vm284, %v272, %v297
        %v310 = vsel %vm285, %v273, %v298
        %v311 = vsel %vm286, %v274, %v299
        %v312 = vsel %vm287, %v275, %v300
        %v313 = vsel %vm288, %v276, %v301
        %v314 = vsel %vm289, %v277, %v302
        %v315 = vlaneseq
        %v316 = vshrl.u32 %v315, 7
        %v317 = vadd.s32 %v316, 8
        %v318 = vadd.s32 %v316, 16
        %v319 = vadd.s32 %v316, 24
        %v320 = vadd.s32 %v316, 32
        %v321 = vadd.s32 %v316, 40
        %v322 = vadd.s32 %v316, 48
        %v323 = vadd.s32 %v316, 56
        %v324 = vadd.s32 %v316, 64
        %v325 = vadd.s32 %v316, 72
        %v326 = vadd.s32 %v316, 11
        %v327 = vadd.s32 %v317, 11
        %v328 = vadd.s32 %v318, 11
        %v329 = vadd.s32 %v319, 11
        %v330 = vadd.s32 %v320, 11
        %v331 = vadd.s32 %v321, 11
        %v332 = vadd.s32 %v322, 11
        %v333 = vadd.s32 %v323, 11
        %v334 = vadd.s32 %v324, 11
        %v335 = vadd.s32 %v325, 11
        %vm336 = vcmp.lt.s32.totalorder %v326, 0
        %v337 = vsub.s32 0, %v326
        %v338 = vsel %vm336, %v337, %v326
        %v339 = vand.u32 %v338, 65535
        %v340 = vshrl.u32 %v338, 16
        %v342 = vmul.u32 %v339, 52429
        %v343 = vmul.u32 %v339, 52428
        %v344 = vmul.u32 %v340, 52429
        %v345 = vmul.u32 %v340, 52428
        %v346 = vshll.u32 %v343, 16
        %v347 = vshrl.u32 %v343, 16
        %v348 = vshll.u32 %v344, 16
        %v349 = vshrl.u32 %v344, 16
        %vm350 = vc.u32 %v342, %v346
        %v351 = vsel %vm350, 1, 0
        %v352 = vadd.s32 %v342, %v346
        %v353 = vadd.s32 %v345, %v351
        %vm354 = vc.u32 %v352, %v348
        %v355 = vsel %vm354, 1, 0
        %v356 = vadd.s32 %v352, %v348
        %v357 = vadd.s32 %v353, %v355
        %v358 = vadd.s32 %v357, %v347
        %v359 = vadd.s32 %v358, %v349
        %v360 = vshrl.u32 %v359, 3
        %v361 = vmul.u32 %v360, 10
        %v362 = vsub.s32 %v338, %v361
        %v363 = vsub.s32 0, %v362
        %v364 = vsel %vm336, %v363, %v362
        %vm365 = vcmp.lt.s32.totalorder %v327, 0
        %v366 = vsub.s32 0, %v327
        %v367 = vsel %vm365, %v366, %v327
        %v368 = vand.u32 %v367, 65535
        %v369 = vshrl.u32 %v367, 16
        %v371 = vmul.u32 %v368, 52429
        %v372 = vmul.u32 %v368, 52428
        %v373 = vmul.u32 %v369, 52429
        %v374 = vmul.u32 %v369, 52428
        %v375 = vshll.u32 %v372, 16
        %v376 = vshrl.u32 %v372, 16
        %v377 = vshll.u32 %v373, 16
        %v378 = vshrl.u32 %v373, 16
        %vm379 = vc.u32 %v371, %v375
        %v380 = vsel %vm379, 1, 0
        %v381 = vadd.s32 %v371, %v375
        %v382 = vadd.s32 %v374, %v380
        %vm383 = vc.u32 %v381, %v377
        %v384 = vsel %vm383, 1, 0
        %v385 = vadd.s32 %v381, %v377
        %v386 = vadd.s32 %v382, %v384
        %v387 = vadd.s32 %v386, %v376
        %v388 = vadd.s32 %v387, %v378
        %v389 = vshrl.u32 %v388, 3
        %v390 = vmul.u32 %v389, 10
        %v391 = vsub.s32 %v367, %v390
        %v392 = vsub.s32 0, %v391
        %v393 = vsel %vm365, %v392, %v391
        %vm394 = vcmp.lt.s32.totalorder %v328, 0
        %v395 = vsub.s32 0, %v328
        %v396 = vsel %vm394, %v395, %v328
        %v397 = vand.u32 %v396, 65535
        %v398 = vshrl.u32 %v396, 16
        %v400 = vmul.u32 %v397, 52429
        %v401 = vmul.u32 %v397, 52428
        %v402 = vmul.u32 %v398, 52429
        %v403 = vmul.u32 %v398, 52428
        %v404 = vshll.u32 %v401, 16
        %v405 = vshrl.u32 %v401, 16
        %v406 = vshll.u32 %v402, 16
        %v407 = vshrl.u32 %v402, 16
        %vm408 = vc.u32 %v400, %v404
        %v409 = vsel %vm408, 1, 0
        %v410 = vadd.s32 %v400, %v404
        %v411 = vadd.s32 %v403, %v409
        %vm412 = vc.u32 %v410, %v406
        %v413 = vsel %vm412, 1, 0
        %v414 = vadd.s32 %v410, %v406
        %v415 = vadd.s32 %v411, %v413
        %v416 = vadd.s32 %v415, %v405
        %v417 = vadd.s32 %v416, %v407
        %v418 = vshrl.u32 %v417, 3
        %v419 = vmul.u32 %v418, 10
        %v420 = vsub.s32 %v396, %v419
        %v421 = vsub.s32 0, %v420
        %v422 = vsel %vm394, %v421, %v420
        %vm423 = vcmp.lt.s32.totalorder %v329, 0
        %v424 = vsub.s32 0, %v329
        %v425 = vsel %vm423, %v424, %v329
        %v426 = vand.u32 %v425, 65535
        %v427 = vshrl.u32 %v425, 16
        %v429 = vmul.u32 %v426, 52429
        %v430 = vmul.u32 %v426, 52428
        %v431 = vmul.u32 %v427, 52429
        %v432 = vmul.u32 %v427, 52428
        %v433 = vshll.u32 %v430, 16
        %v434 = vshrl.u32 %v430, 16
        %v435 = vshll.u32 %v431, 16
        %v436 = vshrl.u32 %v431, 16
        %vm437 = vc.u32 %v429, %v433
        %v438 = vsel %vm437, 1, 0
        %v439 = vadd.s32 %v429, %v433
        %v440 = vadd.s32 %v432, %v438
        %vm441 = vc.u32 %v439, %v435
        %v442 = vsel %vm441, 1, 0
        %v443 = vadd.s32 %v439, %v435
        %v444 = vadd.s32 %v440, %v442
        %v445 = vadd.s32 %v444, %v434
        %v446 = vadd.s32 %v445, %v436
        %v447 = vshrl.u32 %v446, 3
        %v448 = vmul.u32 %v447, 10
        %v449 = vsub.s32 %v425, %v448
        %v450 = vsub.s32 0, %v449
        %v451 = vsel %vm423, %v450, %v449
        %vm452 = vcmp.lt.s32.totalorder %v330, 0
        %v453 = vsub.s32 0, %v330
        %v454 = vsel %vm452, %v453, %v330
        %v455 = vand.u32 %v454, 65535
        %v456 = vshrl.u32 %v454, 16
        %v458 = vmul.u32 %v455, 52429
        %v459 = vmul.u32 %v455, 52428
        %v460 = vmul.u32 %v456, 52429
        %v461 = vmul.u32 %v456, 52428
        %v462 = vshll.u32 %v459, 16
        %v463 = vshrl.u32 %v459, 16
        %v464 = vshll.u32 %v460, 16
        %v465 = vshrl.u32 %v460, 16
        %vm466 = vc.u32 %v458, %v462
        %v467 = vsel %vm466, 1, 0
        %v468 = vadd.s32 %v458, %v462
        %v469 = vadd.s32 %v461, %v467
        %vm470 = vc.u32 %v468, %v464
        %v471 = vsel %vm470, 1, 0
        %v472 = vadd.s32 %v468, %v464
        %v473 = vadd.s32 %v469, %v471
        %v474 = vadd.s32 %v473, %v463
        %v475 = vadd.s32 %v474, %v465
        %v476 = vshrl.u32 %v475, 3
        %v477 = vmul.u32 %v476, 10
        %v478 = vsub.s32 %v454, %v477
        %v479 = vsub.s32 0, %v478
        %v480 = vsel %vm452, %v479, %v478
        %vm481 = vcmp.lt.s32.totalorder %v331, 0
        %v482 = vsub.s32 0, %v331
        %v483 = vsel %vm481, %v482, %v331
        %v484 = vand.u32 %v483, 65535
        %v485 = vshrl.u32 %v483, 16
        %v487 = vmul.u32 %v484, 52429
        %v488 = vmul.u32 %v484, 52428
        %v489 = vmul.u32 %v485, 52429
        %v490 = vmul.u32 %v485, 52428
        %v491 = vshll.u32 %v488, 16
        %v492 = vshrl.u32 %v488, 16
        %v493 = vshll.u32 %v489, 16
        %v494 = vshrl.u32 %v489, 16
        %vm495 = vc.u32 %v487, %v491
        %v496 = vsel %vm495, 1, 0
        %v497 = vadd.s32 %v487, %v491
        %v498 = vadd.s32 %v490, %v496
        %vm499 = vc.u32 %v497, %v493
        %v500 = vsel %vm499, 1, 0
        %v501 = vadd.s32 %v497, %v493
        %v502 = vadd.s32 %v498, %v500
        %v503 = vadd.s32 %v502, %v492
        %v504 = vadd.s32 %v503, %v494
        %v505 = vshrl.u32 %v504, 3
        %v506 = vmul.u32 %v505, 10
        %v507 = vsub.s32 %v483, %v506
        %v508 = vsub.s32 0, %v507
        %v509 = vsel %vm481, %v508, %v507
        %vm510 = vcmp.lt.s32.totalorder %v332, 0
        %v511 = vsub.s32 0, %v332
        %v512 = vsel %vm510, %v511, %v332
        %v513 = vand.u32 %v512, 65535
        %v514 = vshrl.u32 %v512, 16
        %v516 = vmul.u32 %v513, 52429
        %v517 = vmul.u32 %v513, 52428
        %v518 = vmul.u32 %v514, 52429
        %v519 = vmul.u32 %v514, 52428
        %v520 = vshll.u32 %v517, 16
        %v521 = vshrl.u32 %v517, 16
        %v522 = vshll.u32 %v518, 16
        %v523 = vshrl.u32 %v518, 16
        %vm524 = vc.u32 %v516, %v520
        %v525 = vsel %vm524, 1, 0
        %v526 = vadd.s32 %v516, %v520
        %v527 = vadd.s32 %v519, %v525
        %vm528 = vc.u32 %v526, %v522
        %v529 = vsel %vm528, 1, 0
        %v530 = vadd.s32 %v526, %v522
        %v531 = vadd.s32 %v527, %v529
        %v532 = vadd.s32 %v531, %v521
        %v533 = vadd.s32 %v532, %v523
        %v534 = vshrl.u32 %v533, 3
        %v535 = vmul.u32 %v534, 10
        %v536 = vsub.s32 %v512, %v535
        %v537 = vsub.s32 0, %v536
        %v538 = vsel %vm510, %v537, %v536
        %vm539 = vcmp.lt.s32.totalorder %v333, 0
        %v540 = vsub.s32 0, %v333
        %v541 = vsel %vm539, %v540, %v333
        %v542 = vand.u32 %v541, 65535
        %v543 = vshrl.u32 %v541, 16
        %v545 = vmul.u32 %v542, 52429
        %v546 = vmul.u32 %v542, 52428
        %v547 = vmul.u32 %v543, 52429
        %v548 = vmul.u32 %v543, 52428
        %v549 = vshll.u32 %v546, 16
        %v550 = vshrl.u32 %v546, 16
        %v551 = vshll.u32 %v547, 16
        %v552 = vshrl.u32 %v547, 16
        %vm553 = vc.u32 %v545, %v549
        %v554 = vsel %vm553, 1, 0
        %v555 = vadd.s32 %v545, %v549
        %v556 = vadd.s32 %v548, %v554
        %vm557 = vc.u32 %v555, %v551
        %v558 = vsel %vm557, 1, 0
        %v559 = vadd.s32 %v555, %v551
        %v560 = vadd.s32 %v556, %v558
        %v561 = vadd.s32 %v560, %v550
        %v562 = vadd.s32 %v561, %v552
        %v563 = vshrl.u32 %v562, 3
        %v564 = vmul.u32 %v563, 10
        %v565 = vsub.s32 %v541, %v564
        %v566 = vsub.s32 0, %v565
        %v567 = vsel %vm539, %v566, %v565
        %vm568 = vcmp.lt.s32.totalorder %v334, 0
        %v569 = vsub.s32 0, %v334
        %v570 = vsel %vm568, %v569, %v334
        %v571 = vand.u32 %v570, 65535
        %v572 = vshrl.u32 %v570, 16
        %v574 = vmul.u32 %v571, 52429
        %v575 = vmul.u32 %v571, 52428
        %v576 = vmul.u32 %v572, 52429
        %v577 = vmul.u32 %v572, 52428
        %v578 = vshll.u32 %v575, 16
        %v579 = vshrl.u32 %v575, 16
        %v580 = vshll.u32 %v576, 16
        %v581 = vshrl.u32 %v576, 16
        %vm582 = vc.u32 %v574, %v578
        %v583 = vsel %vm582, 1, 0
        %v584 = vadd.s32 %v574, %v578
        %v585 = vadd.s32 %v577, %v583
        %vm586 = vc.u32 %v584, %v580
        %v587 = vsel %vm586, 1, 0
        %v588 = vadd.s32 %v584, %v580
        %v589 = vadd.s32 %v585, %v587
        %v590 = vadd.s32 %v589, %v579
        %v591 = vadd.s32 %v590, %v581
        %v592 = vshrl.u32 %v591, 3
        %v593 = vmul.u32 %v592, 10
        %v594 = vsub.s32 %v570, %v593
        %v595 = vsub.s32 0, %v594
        %v596 = vsel %vm568, %v595, %v594
        %vm597 = vcmp.lt.s32.totalorder %v335, 0
        %v598 = vsub.s32 0, %v335
        %v599 = vsel %vm597, %v598, %v335
        %v600 = vand.u32 %v599, 65535
        %v601 = vshrl.u32 %v599, 16
        %v603 = vmul.u32 %v600, 52429
        %v604 = vmul.u32 %v600, 52428
        %v605 = vmul.u32 %v601, 52429
        %v606 = vmul.u32 %v601, 52428
        %v607 = vshll.u32 %v604, 16
        %v608 = vshrl.u32 %v604, 16
        %v609 = vshll.u32 %v605, 16
        %v610 = vshrl.u32 %v605, 16
        %vm611 = vc.u32 %v603, %v607
        %v612 = vsel %vm611, 1, 0
        %v613 = vadd.s32 %v603, %v607
        %v614 = vadd.s32 %v606, %v612
        %vm615 = vc.u32 %v613, %v609
        %v616 = vsel %vm615, 1, 0
        %v617 = vadd.s32 %v613, %v609
        %v618 = vadd.s32 %v614, %v616
        %v619 = vadd.s32 %v618, %v608
        %v620 = vadd.s32 %v619, %v610
        %v621 = vshrl.u32 %v620, 3
        %v622 = vmul.u32 %v621, 10
        %v623 = vsub.s32 %v599, %v622
        %v624 = vsub.s32 0, %v623
        %v625 = vsel %vm597, %v624, %v623
        %vm626 = vcmp.ne.s32.totalorder %v364, 0
        %vm627 = vcmp.ne.s32.totalorder %v393, 0
        %vm628 = vcmp.ne.s32.totalorder %v422, 0
        %vm629 = vcmp.ne.s32.totalorder %v451, 0
        %vm630 = vcmp.ne.s32.totalorder %v480, 0
        %vm631 = vcmp.ne.s32.totalorder %v509, 0
        %vm632 = vcmp.ne.s32.totalorder %v538, 0
        %vm633 = vcmp.ne.s32.totalorder %v567, 0
        %vm634 = vcmp.ne.s32.totalorder %v596, 0
        %vm635 = vcmp.ne.s32.totalorder %v625, 0
        %vm636 = vcmp.lt.s32.totalorder %v364, 0
        %vm637 = vcmp.lt.s32.totalorder %v393, 0
        %vm638 = vcmp.lt.s32.totalorder %v422, 0
        %vm639 = vcmp.lt.s32.totalorder %v451, 0
        %vm640 = vcmp.lt.s32.totalorder %v480, 0
        %vm641 = vcmp.lt.s32.totalorder %v509, 0
        %vm642 = vcmp.lt.s32.totalorder %v538, 0
        %vm643 = vcmp.lt.s32.totalorder %v567, 0
        %vm644 = vcmp.lt.s32.totalorder %v596, 0
        %vm645 = vcmp.lt.s32.totalorder %v625, 0
        %vm646 = vmand %vm636, %vm626
        %vm647 = vmand %vm637, %vm627
        %vm648 = vmand %vm638, %vm628
        %vm649 = vmand %vm639, %vm629
        %vm650 = vmand %vm640, %vm630
        %vm651 = vmand %vm641, %vm631
        %vm652 = vmand %vm642, %vm632
        %vm653 = vmand %vm643, %vm633
        %vm654 = vmand %vm644, %vm634
        %vm655 = vmand %vm645, %vm635
        %v656 = vadd.s32 %v364, 10
        %v657 = vadd.s32 %v393, 10
        %v658 = vadd.s32 %v422, 10
        %v659 = vadd.s32 %v451, 10
        %v660 = vadd.s32 %v480, 10
        %v661 = vadd.s32 %v509, 10
        %v662 = vadd.s32 %v538, 10
        %v663 = vadd.s32 %v567, 10
        %v664 = vadd.s32 %v596, 10
        %v665 = vadd.s32 %v625, 10
        %v666 = vsel %vm646, %v656, %v364
        %v667 = vsel %vm647, %v657, %v393
        %v668 = vsel %vm648, %v658, %v422
        %v669 = vsel %vm649, %v659, %v451
        %v670 = vsel %vm650, %v660, %v480
        %v671 = vsel %vm651, %v661, %v509
        %v672 = vsel %vm652, %v662, %v538
        %v673 = vsel %vm653, %v663, %v567
        %v674 = vsel %vm654, %v664, %v596
        %v675 = vsel %vm655, %v665, %v625
        %vm676 = vcmp.ge.s32.totalorder %v666, 1
        %vm677 = vcmp.ge.s32.totalorder %v667, 1
        %vm678 = vcmp.ge.s32.totalorder %v668, 1
        %vm679 = vcmp.ge.s32.totalorder %v669, 1
        %vm680 = vcmp.ge.s32.totalorder %v670, 1
        %vm681 = vcmp.ge.s32.totalorder %v671, 1
        %vm682 = vcmp.ge.s32.totalorder %v672, 1
        %vm683 = vcmp.ge.s32.totalorder %v673, 1
        %vm684 = vcmp.ge.s32.totalorder %v674, 1
        %vm685 = vcmp.ge.s32.totalorder %v675, 1
        %vm686 = vcmp.le.s32.totalorder %v666, 8
        %vm687 = vcmp.le.s32.totalorder %v667, 8
        %vm688 = vcmp.le.s32.totalorder %v668, 8
        %vm689 = vcmp.le.s32.totalorder %v669, 8
        %vm690 = vcmp.le.s32.totalorder %v670, 8
        %vm691 = vcmp.le.s32.totalorder %v671, 8
        %vm692 = vcmp.le.s32.totalorder %v672, 8
        %vm693 = vcmp.le.s32.totalorder %v673, 8
        %vm694 = vcmp.le.s32.totalorder %v674, 8
        %vm695 = vcmp.le.s32.totalorder %v675, 8
        %vm696 = vmand %vm676, %vm686
        %vm697 = vmand %vm677, %vm687
        %vm698 = vmand %vm678, %vm688
        %vm699 = vmand %vm679, %vm689
        %vm700 = vmand %vm680, %vm690
        %vm701 = vmand %vm681, %vm691
        %vm702 = vmand %vm682, %vm692
        %vm703 = vmand %vm683, %vm693
        %vm704 = vmand %vm684, %vm694
        %vm705 = vmand %vm685, %vm695
        %v706 = vld [vmem:[%s2] sm:$0xff]
        %v707 = vld [vmem:[%s2 + $0x8] sm:$0xff]
        %s708 = scalar_lea.vmem %s2, 16
        %v709 = vld [vmem:[%s708] sm:$0xff]
        %v710 = vld [vmem:[%s708 + $0x8] sm:$0xff]
        %vm721 = vcmask 1046528
        %v722 = vrot.slane %v303, 1
        %v723 = vrot.slane %v304, 1
        %v724 = vsel %vm721, %v722, %v723
        %v725 = vrot.slane %v305, 1
        %v726 = vsel %vm721, %v723, %v725
        %v727 = vrot.slane %v306, 1
        %v728 = vsel %vm721, %v725, %v727
        %v729 = vrot.slane %v307, 1
        %v730 = vsel %vm721, %v727, %v729
        %v731 = vrot.slane %v308, 1
        %v732 = vsel %vm721, %v729, %v731
        %v733 = vrot.slane %v309, 1
        %v734 = vsel %vm721, %v731, %v733
        %v735 = vrot.slane %v310, 1
        %v736 = vsel %vm721, %v733, %v735
        %v737 = vrot.slane %v311, 1
        %v738 = vsel %vm721, %v735, %v737
        %v739 = vrot.slane %v312, 1
        %v740 = vsel %vm721, %v737, %v739
        %vm741 = vcmask 130048
        %v742 = vsel %vm741, %v724, 0
        %v744 = vsel %vm741, %v726, 0
        %v746 = vsel %vm741, %v728, 0
        %v748 = vsel %vm741, %v730, 0
        %v750 = vsel %vm741, %v732, 0
        %v752 = vsel %vm741, %v734, 0
        %v754 = vsel %vm741, %v736, 0
        %v756 = vsel %vm741, %v738, 0
        %v758 = vsel %vm741, %v740, 0
        %v760 = vsel %vm741, %v739, 0
        %762 = vmatpush.msra.mxu0 0.0
        %763 = vmatpush.msra.mxu0 0.0
        %764 = vmatpush.msra.mxu0 0.0
        %765 = vmatpush.msra.mxu0 0.0
        %766 = vmatpush.msra.mxu0 0.0
        %767 = vmatpush.msra.mxu0 0.0
        %768 = vmatpush.msra.mxu0 0.0
        %769 = vmatpush.msra.mxu0 0.0
        %770 = vmatpush.msra.mxu0 0.0
        %771 = vmatpush.msra.mxu0 0.0
        %772 = vmatpush.msra.mxu0 0.0
        %773 = vmatpush.msra.mxu0 0.0
        %774 = vmatpush.msra.mxu0 0.0
        %775 = vmatpush.msra.mxu0 0.0
        %776 = vmatpush.msra.mxu0 %v710
        %777 = vmatpush.msra.mxu0 %v709
        %778 = vmatmul.f32.gmra.mxu0 %v742
        %v779 = vpop.f32.mrf.mxu0
        %v780 = vadd.f32 0.0, %v779
        %781 = vmatmul.f32.gmra.mxu0 %v744
        %v782 = vpop.f32.mrf.mxu0
        %v783 = vadd.f32 0.0, %v782
        %784 = vmatmul.f32.gmra.mxu0 %v746
        %v785 = vpop.f32.mrf.mxu0
        %v786 = vadd.f32 0.0, %v785
        %787 = vmatmul.f32.gmra.mxu0 %v748
        %v788 = vpop.f32.mrf.mxu0
        %v789 = vadd.f32 0.0, %v788
        %790 = vmatmul.f32.gmra.mxu0 %v750
        %v791 = vpop.f32.mrf.mxu0
        %v792 = vadd.f32 0.0, %v791
        %793 = vmatmul.f32.gmra.mxu0 %v752
        %v794 = vpop.f32.mrf.mxu0
        %v795 = vadd.f32 0.0, %v794
        %796 = vmatmul.f32.gmra.mxu0 %v754
        %v797 = vpop.f32.mrf.mxu0
        %v798 = vadd.f32 0.0, %v797
        %799 = vmatmul.f32.gmra.mxu0 %v756
        %v800 = vpop.f32.mrf.mxu0
        %v801 = vadd.f32 0.0, %v800
        %802 = vmatmul.f32.gmra.mxu0 %v758
        %v803 = vpop.f32.mrf.mxu0
        %v804 = vadd.f32 0.0, %v803
        %805 = vmatmul.f32.gmra.mxu0 %v760
        %v806 = vpop.f32.mrf.mxu0
        %v807 = vadd.f32 0.0, %v806
        %808 = vdwg.mxu0
        %v809 = vsel %vm741, %v303, 0
        %v811 = vsel %vm741, %v304, 0
        %v813 = vsel %vm741, %v305, 0
        %v815 = vsel %vm741, %v306, 0
        %v817 = vsel %vm741, %v307, 0
        %v819 = vsel %vm741, %v308, 0
        %v821 = vsel %vm741, %v309, 0
        %v823 = vsel %vm741, %v310, 0
        %v825 = vsel %vm741, %v311, 0
        %v827 = vsel %vm741, %v312, 0
        %829 = vmatpush.msra.mxu0 0.0
        %830 = vmatpush.msra.mxu0 0.0
        %831 = vmatpush.msra.mxu0 0.0
        %832 = vmatpush.msra.mxu0 0.0
        %833 = vmatpush.msra.mxu0 0.0
        %834 = vmatpush.msra.mxu0 0.0
        %835 = vmatpush.msra.mxu0 0.0
        %836 = vmatpush.msra.mxu0 0.0
        %837 = vmatpush.msra.mxu0 0.0
        %838 = vmatpush.msra.mxu0 0.0
        %839 = vmatpush.msra.mxu0 0.0
        %840 = vmatpush.msra.mxu0 0.0
        %841 = vmatpush.msra.mxu0 0.0
        %842 = vmatpush.msra.mxu0 0.0
        %843 = vmatpush.msra.mxu0 %v707
        %844 = vmatpush.msra.mxu0 %v706
        %845 = vmatmul.f32.gmra.mxu0 %v809
        %v846 = vpop.f32.mrf.mxu0
        %v847 = vadd.f32 %v780, %v846
        %848 = vmatmul.f32.gmra.mxu0 %v811
        %v849 = vpop.f32.mrf.mxu0
        %v850 = vadd.f32 %v783, %v849
        %851 = vmatmul.f32.gmra.mxu0 %v813
        %v852 = vpop.f32.mrf.mxu0
        %v853 = vadd.f32 %v786, %v852
        %854 = vmatmul.f32.gmra.mxu0 %v815
        %v855 = vpop.f32.mrf.mxu0
        %v856 = vadd.f32 %v789, %v855
        %857 = vmatmul.f32.gmra.mxu0 %v817
        %v858 = vpop.f32.mrf.mxu0
        %v859 = vadd.f32 %v792, %v858
        %860 = vmatmul.f32.gmra.mxu0 %v819
        %v861 = vpop.f32.mrf.mxu0
        %v862 = vadd.f32 %v795, %v861
        %863 = vmatmul.f32.gmra.mxu0 %v821
        %v864 = vpop.f32.mrf.mxu0
        %v865 = vadd.f32 %v798, %v864
        %866 = vmatmul.f32.gmra.mxu0 %v823
        %v867 = vpop.f32.mrf.mxu0
        %v868 = vadd.f32 %v801, %v867
        %869 = vmatmul.f32.gmra.mxu0 %v825
        %v870 = vpop.f32.mrf.mxu0
        %v871 = vadd.f32 %v804, %v870
        %872 = vmatmul.f32.gmra.mxu0 %v827
        %v873 = vpop.f32.mrf.mxu0
        %v874 = vadd.f32 %v807, %v873
        %875 = vdwg.mxu0
        %s876 = scalar_lea.vmem %s2, 32
        %v877 = vld [vmem:[%s876] sm:$0xff]
        %v878 = vld [vmem:[%s876 + $0x8] sm:$0xff]
        %vm880 = vcmask 1045504
        %v881 = vrot.slane %v304, 2
        %v882 = vrot.slane %v305, 2
        %v883 = vsel %vm880, %v881, %v882
        %v884 = vrot.slane %v306, 2
        %v885 = vsel %vm880, %v882, %v884
        %v886 = vrot.slane %v307, 2
        %v887 = vsel %vm880, %v884, %v886
        %v888 = vrot.slane %v308, 2
        %v889 = vsel %vm880, %v886, %v888
        %v890 = vrot.slane %v309, 2
        %v891 = vsel %vm880, %v888, %v890
        %v892 = vrot.slane %v310, 2
        %v893 = vsel %vm880, %v890, %v892
        %v894 = vrot.slane %v311, 2
        %v895 = vsel %vm880, %v892, %v894
        %v896 = vrot.slane %v312, 2
        %v897 = vsel %vm880, %v894, %v896
        %v898 = vrot.slane %v313, 2
        %v899 = vsel %vm880, %v896, %v898
        %v900 = vsel %vm741, %v883, 0
        %v902 = vsel %vm741, %v885, 0
        %v904 = vsel %vm741, %v887, 0
        %v906 = vsel %vm741, %v889, 0
        %v908 = vsel %vm741, %v891, 0
        %v910 = vsel %vm741, %v893, 0
        %v912 = vsel %vm741, %v895, 0
        %v914 = vsel %vm741, %v897, 0
        %v916 = vsel %vm741, %v899, 0
        %v918 = vsel %vm741, %v898, 0
        %920 = vmatpush.msra.mxu0 0.0
        %921 = vmatpush.msra.mxu0 0.0
        %922 = vmatpush.msra.mxu0 0.0
        %923 = vmatpush.msra.mxu0 0.0
        %924 = vmatpush.msra.mxu0 0.0
        %925 = vmatpush.msra.mxu0 0.0
        %926 = vmatpush.msra.mxu0 0.0
        %927 = vmatpush.msra.mxu0 0.0
        %928 = vmatpush.msra.mxu0 0.0
        %929 = vmatpush.msra.mxu0 0.0
        %930 = vmatpush.msra.mxu0 0.0
        %931 = vmatpush.msra.mxu0 0.0
        %932 = vmatpush.msra.mxu0 0.0
        %933 = vmatpush.msra.mxu0 0.0
        %934 = vmatpush.msra.mxu0 %v878
        %935 = vmatpush.msra.mxu0 %v877
        %936 = vmatmul.f32.gmra.mxu0 %v900
        %v937 = vpop.f32.mrf.mxu0
        %v938 = vadd.f32 0.0, %v937
        %939 = vmatmul.f32.gmra.mxu0 %v902
        %v940 = vpop.f32.mrf.mxu0
        %v941 = vadd.f32 0.0, %v940
        %942 = vmatmul.f32.gmra.mxu0 %v904
        %v943 = vpop.f32.mrf.mxu0
        %v944 = vadd.f32 0.0, %v943
        %945 = vmatmul.f32.gmra.mxu0 %v906
        %v946 = vpop.f32.mrf.mxu0
        %v947 = vadd.f32 0.0, %v946
        %948 = vmatmul.f32.gmra.mxu0 %v908
        %v949 = vpop.f32.mrf.mxu0
        %v950 = vadd.f32 0.0, %v949
        %951 = vmatmul.f32.gmra.mxu0 %v910
        %v952 = vpop.f32.mrf.mxu0
        %v953 = vadd.f32 0.0, %v952
        %954 = vmatmul.f32.gmra.mxu0 %v912
        %v955 = vpop.f32.mrf.mxu0
        %v956 = vadd.f32 0.0, %v955
        %957 = vmatmul.f32.gmra.mxu0 %v914
        %v958 = vpop.f32.mrf.mxu0
        %v959 = vadd.f32 0.0, %v958
        %960 = vmatmul.f32.gmra.mxu0 %v916
        %v961 = vpop.f32.mrf.mxu0
        %v962 = vadd.f32 0.0, %v961
        %963 = vmatmul.f32.gmra.mxu0 %v918
        %v964 = vpop.f32.mrf.mxu0
        %v965 = vadd.f32 0.0, %v964
        %966 = vdwg.mxu0
        %v967 = vadd.f32 %v847, %v938
        %v968 = vadd.f32 %v850, %v941
        %v969 = vadd.f32 %v853, %v944
        %v970 = vadd.f32 %v856, %v947
        %v971 = vadd.f32 %v859, %v950
        %v972 = vadd.f32 %v862, %v953
        %v973 = vadd.f32 %v865, %v956
        %v974 = vadd.f32 %v868, %v959
        %v975 = vadd.f32 %v871, %v962
        %v976 = vadd.f32 %v874, %v965
        %s977 = scalar_lea.vmem %s2, 48
        %v978 = vld [vmem:[%s977] sm:$0xff]
        %v979 = vld [vmem:[%s977 + $0x8] sm:$0xff]
        %vm981 = vcmask 1044480
        %v982 = vrot.slane %v304, 3
        %v983 = vrot.slane %v305, 3
        %v984 = vsel %vm981, %v982, %v983
        %v985 = vrot.slane %v306, 3
        %v986 = vsel %vm981, %v983, %v985
        %v987 = vrot.slane %v307, 3
        %v988 = vsel %vm981, %v985, %v987
        %v989 = vrot.slane %v308, 3
        %v990 = vsel %vm981, %v987, %v989
        %v991 = vrot.slane %v309, 3
        %v992 = vsel %vm981, %v989, %v991
        %v993 = vrot.slane %v310, 3
        %v994 = vsel %vm981, %v991, %v993
        %v995 = vrot.slane %v311, 3
        %v996 = vsel %vm981, %v993, %v995
        %v997 = vrot.slane %v312, 3
        %v998 = vsel %vm981, %v995, %v997
        %v999 = vrot.slane %v313, 3
        %v1000 = vsel %vm981, %v997, %v999
        %v1001 = vrot.slane %v314, 3
        %v1002 = vsel %vm981, %v999, %v1001
        %v1003 = vsel %vm741, %v984, 0
        %v1005 = vsel %vm741, %v986, 0
        %v1007 = vsel %vm741, %v988, 0
        %v1009 = vsel %vm741, %v990, 0
        %v1011 = vsel %vm741, %v992, 0
        %v1013 = vsel %vm741, %v994, 0
        %v1015 = vsel %vm741, %v996, 0
        %v1017 = vsel %vm741, %v998, 0
        %v1019 = vsel %vm741, %v1000, 0
        %v1021 = vsel %vm741, %v1002, 0
        %1023 = vmatpush.msra.mxu0 0.0
        %1024 = vmatpush.msra.mxu0 0.0
        %1025 = vmatpush.msra.mxu0 0.0
        %1026 = vmatpush.msra.mxu0 0.0
        %1027 = vmatpush.msra.mxu0 0.0
        %1028 = vmatpush.msra.mxu0 0.0
        %1029 = vmatpush.msra.mxu0 0.0
        %1030 = vmatpush.msra.mxu0 0.0
        %1031 = vmatpush.msra.mxu0 0.0
        %1032 = vmatpush.msra.mxu0 0.0
        %1033 = vmatpush.msra.mxu0 0.0
        %1034 = vmatpush.msra.mxu0 0.0
        %1035 = vmatpush.msra.mxu0 0.0
        %1036 = vmatpush.msra.mxu0 0.0
        %1037 = vmatpush.msra.mxu0 %v979
        %1038 = vmatpush.msra.mxu0 %v978
        %1039 = vmatmul.f32.gmra.mxu0 %v1003
        %v1040 = vpop.f32.mrf.mxu0
        %v1041 = vadd.f32 0.0, %v1040
        %1042 = vmatmul.f32.gmra.mxu0 %v1005
        %v1043 = vpop.f32.mrf.mxu0
        %v1044 = vadd.f32 0.0, %v1043
        %1045 = vmatmul.f32.gmra.mxu0 %v1007
        %v1046 = vpop.f32.mrf.mxu0
        %v1047 = vadd.f32 0.0, %v1046
        %1048 = vmatmul.f32.gmra.mxu0 %v1009
        %v1049 = vpop.f32.mrf.mxu0
        %v1050 = vadd.f32 0.0, %v1049
        %1051 = vmatmul.f32.gmra.mxu0 %v1011
        %v1052 = vpop.f32.mrf.mxu0
        %v1053 = vadd.f32 0.0, %v1052
        %1054 = vmatmul.f32.gmra.mxu0 %v1013
        %v1055 = vpop.f32.mrf.mxu0
        %v1056 = vadd.f32 0.0, %v1055
        %1057 = vmatmul.f32.gmra.mxu0 %v1015
        %v1058 = vpop.f32.mrf.mxu0
        %v1059 = vadd.f32 0.0, %v1058
        %1060 = vmatmul.f32.gmra.mxu0 %v1017
        %v1061 = vpop.f32.mrf.mxu0
        %v1062 = vadd.f32 0.0, %v1061
        %1063 = vmatmul.f32.gmra.mxu0 %v1019
        %v1064 = vpop.f32.mrf.mxu0
        %v1065 = vadd.f32 0.0, %v1064
        %1066 = vmatmul.f32.gmra.mxu0 %v1021
        %v1067 = vpop.f32.mrf.mxu0
        %v1068 = vadd.f32 0.0, %v1067
        %1069 = vdwg.mxu0
        %v1070 = vadd.f32 %v967, %v1041
        %v1071 = vadd.f32 %v968, %v1044
        %v1072 = vadd.f32 %v969, %v1047
        %v1073 = vadd.f32 %v970, %v1050
        %v1074 = vadd.f32 %v971, %v1053
        %v1075 = vadd.f32 %v972, %v1056
        %v1076 = vadd.f32 %v973, %v1059
        %v1077 = vadd.f32 %v974, %v1062
        %v1078 = vadd.f32 %v975, %v1065
        %v1079 = vadd.f32 %v976, %v1068
        %v1080 = vld [vmem:[%s3] sm:$0x1]
        %v1082 = vperm.slane %v1080, 0
        %v1084 = vadd.f32 %v1070, %v1082
        %v1085 = vadd.f32 %v1071, %v1082
        %v1086 = vadd.f32 %v1072, %v1082
        %v1087 = vadd.f32 %v1073, %v1082
        %v1088 = vadd.f32 %v1074, %v1082
        %v1089 = vadd.f32 %v1075, %v1082
        %v1090 = vadd.f32 %v1076, %v1082
        %v1091 = vadd.f32 %v1077, %v1082
        %v1092 = vadd.f32 %v1078, %v1082
        %v1093 = vadd.f32 %v1079, %v1082
        %vm1094 = vcmp.ge.f32.partialorder %v1084, 0.0
        %vm1095 = vcmp.ge.f32.partialorder %v1085, 0.0
        %vm1096 = vcmp.ge.f32.partialorder %v1086, 0.0
        %vm1097 = vcmp.ge.f32.partialorder %v1087, 0.0
        %vm1098 = vcmp.ge.f32.partialorder %v1088, 0.0
        %vm1099 = vcmp.ge.f32.partialorder %v1089, 0.0
        %vm1100 = vcmp.ge.f32.partialorder %v1090, 0.0
        %vm1101 = vcmp.ge.f32.partialorder %v1091, 0.0
        %vm1102 = vcmp.ge.f32.partialorder %v1092, 0.0
        %vm1103 = vcmp.ge.f32.partialorder %v1093, 0.0
        %v1104 = vstv %s265
        %v1105 = vmul.f32 %v1104, %v1084
        %v1106 = vmul.f32 %v1104, %v1085
        %v1107 = vmul.f32 %v1104, %v1086
        %v1108 = vmul.f32 %v1104, %v1087
        %v1109 = vmul.f32 %v1104, %v1088
        %v1110 = vmul.f32 %v1104, %v1089
        %v1111 = vmul.f32 %v1104, %v1090
        %v1112 = vmul.f32 %v1104, %v1091
        %v1113 = vmul.f32 %v1104, %v1092
        %v1114 = vmul.f32 %v1104, %v1093
        %v1115 = vsel %vm1094, %v1084, %v1105
        %v1116 = vsel %vm1095, %v1085, %v1106
        %v1117 = vsel %vm1096, %v1086, %v1107
        %v1118 = vsel %vm1097, %v1087, %v1108
        %v1119 = vsel %vm1098, %v1088, %v1109
        %v1120 = vsel %vm1099, %v1089, %v1110
        %v1121 = vsel %vm1100, %v1090, %v1111
        %v1122 = vsel %vm1101, %v1091, %v1112
        %v1123 = vsel %vm1102, %v1092, %v1113
        %v1124 = vsel %vm1103, %v1093, %v1114
        %v1125 = vsel %vm696, 1, 0
        %v1126 = vsel %vm697, 1, 0
        %v1127 = vsel %vm698, 1, 0
        %v1128 = vsel %vm699, 1, 0
        %v1129 = vsel %vm700, 1, 0
        %v1130 = vsel %vm701, 1, 0
        %v1131 = vsel %vm702, 1, 0
        %v1132 = vsel %vm703, 1, 0
        %v1133 = vsel %vm704, 1, 0
        %v1134 = vsel %vm705, 1, 0
        %vm1135 = vcmp.eq.s32.totalorder %v1125, 1
        %vm1136 = vcmp.eq.s32.totalorder %v1126, 1
        %vm1137 = vcmp.eq.s32.totalorder %v1127, 1
        %vm1138 = vcmp.eq.s32.totalorder %v1128, 1
        %vm1139 = vcmp.eq.s32.totalorder %v1129, 1
        %vm1140 = vcmp.eq.s32.totalorder %v1130, 1
        %vm1141 = vcmp.eq.s32.totalorder %v1131, 1
        %vm1142 = vcmp.eq.s32.totalorder %v1132, 1
        %vm1143 = vcmp.eq.s32.totalorder %v1133, 1
        %vm1144 = vcmp.eq.s32.totalorder %v1134, 1
        %v1145 = vsel %vm1135, %v1115, 0.0
        %v1146 = vsel %vm1136, %v1116, 0.0
        %v1147 = vsel %vm1137, %v1117, 0.0
        %v1148 = vsel %vm1138, %v1118, 0.0
        %v1149 = vsel %vm1139, %v1119, 0.0
        %v1150 = vsel %vm1140, %v1120, 0.0
        %v1151 = vsel %vm1141, %v1121, 0.0
        %v1152 = vsel %vm1142, %v1122, 0.0
        %v1153 = vsel %vm1143, %v1123, 0.0
        %v1154 = vsel %vm1144, %v1124, 0.0
        %vm1155 = vcmask 64512
        %1156 = vst.msk [vmem:[#allocation2] sm:$0xff] %vm1155, 0.0
        %1157 = vst.msk [vmem:[#allocation2 + $0x8] sm:$0xff] %vm1155, 0.0
        %1158 = vst.msk [vmem:[#allocation2 + $0x10] sm:$0xff] %vm1155, 0.0
        %1159 = vst.msk [vmem:[#allocation2 + $0x18] sm:$0xff] %vm1155, 0.0
        %1160 = vst.msk [vmem:[#allocation2 + $0x20] sm:$0xff] %vm1155, 0.0
        %1161 = vst.msk [vmem:[#allocation2 + $0x28] sm:$0xff] %vm1155, 0.0
        %1162 = vst.msk [vmem:[#allocation2 + $0x30] sm:$0xff] %vm1155, 0.0
        %1163 = vst.msk [vmem:[#allocation2 + $0x38] sm:$0xff] %vm1155, 0.0
        %1164 = vst.msk [vmem:[#allocation2 + $0x40] sm:$0xff] %vm1155, 0.0
        %1165 = vst.msk [vmem:[#allocation2 + $0x48] sm:$0xff] %vm1155, 0.0
        %1166 = vst.msk [vmem:[#allocation2 + $0x50] sm:$0xff] %vm1155, 0.0
        %1167 = vst.msk [vmem:[#allocation2 + $0x58] sm:$0xff] %vm1155, 0.0
        %vm1168 = vcmask 60416
        %1169 = vst.msk [vmem:[#allocation2 + $0x60] sm:$0xf] %vm1168, 0.0
        %1170 = vst.msk [vmem:[#allocation2 + $0xb] sm:$0xff] %vm1155, %v1145
        %1171 = vst.msk [vmem:[#allocation2 + $0x13] sm:$0xff] %vm1155, %v1146
        %1172 = vst.msk [vmem:[#allocation2 + $0x1b] sm:$0xff] %vm1155, %v1147
        %1173 = vst.msk [vmem:[#allocation2 + $0x23] sm:$0xff] %vm1155, %v1148
        %1174 = vst.msk [vmem:[#allocation2 + $0x2b] sm:$0xff] %vm1155, %v1149
        %1175 = vst.msk [vmem:[#allocation2 + $0x33] sm:$0xff] %vm1155, %v1150
        %1176 = vst.msk [vmem:[#allocation2 + $0x3b] sm:$0xff] %vm1155, %v1151
        %1177 = vst.msk [vmem:[#allocation2 + $0x43] sm:$0xff] %vm1155, %v1152
        %1178 = vst.msk [vmem:[#allocation2 + $0x4b] sm:$0xff] %vm1155, %v1153
        %vm1179 = vcmask 62464
        %1180 = vst.msk [vmem:[#allocation2 + $0x53] sm:$0x3f] %vm1179, %v1154
        %v1181 = vld [vmem:[#allocation2] sm:$0xff]
        %v1182 = vld [vmem:[#allocation2 + $0x8] sm:$0xff]
        %v1183 = vld [vmem:[#allocation2 + $0x10] sm:$0xff]
        %v1184 = vld [vmem:[#allocation2 + $0x18] sm:$0xff]
        %v1185 = vld [vmem:[#allocation2 + $0x20] sm:$0xff]
        %v1186 = vld [vmem:[#allocation2 + $0x28] sm:$0xff]
        %v1187 = vld [vmem:[#allocation2 + $0x30] sm:$0xff]
        %v1188 = vld [vmem:[#allocation2 + $0x38] sm:$0xff]
        %v1189 = vld [vmem:[#allocation2 + $0x40] sm:$0xff]
        %v1190 = vld [vmem:[#allocation2 + $0x48] sm:$0xff]
        %v1191 = vld [vmem:[#allocation2 + $0x50] sm:$0xff]
        %v1192 = vld [vmem:[#allocation2 + $0x58] sm:$0xff]
        %v1193 = vld [vmem:[#allocation2 + $0x60] sm:$0xf]
        %v1194 = vld [vmem:[%s4] sm:$0xff]
        %s1195 = scalar_lea.vmem %s4, 8
        %v1196 = vld [vmem:[%s1195] sm:$0xff]
        %v1207 = vrot.slane %v1181, 1
        %v1208 = vrot.slane %v1182, 1
        %v1209 = vsel %vm721, %v1207, %v1208
        %v1210 = vrot.slane %v1183, 1
        %v1211 = vsel %vm721, %v1208, %v1210
        %v1212 = vrot.slane %v1184, 1
        %v1213 = vsel %vm721, %v1210, %v1212
        %v1214 = vrot.slane %v1185, 1
        %v1215 = vsel %vm721, %v1212, %v1214
        %v1216 = vrot.slane %v1186, 1
        %v1217 = vsel %vm721, %v1214, %v1216
        %v1218 = vrot.slane %v1187, 1
        %v1219 = vsel %vm721, %v1216, %v1218
        %v1220 = vrot.slane %v1188, 1
        %v1221 = vsel %vm721, %v1218, %v1220
        %v1222 = vrot.slane %v1189, 1
        %v1223 = vsel %vm721, %v1220, %v1222
        %v1224 = vrot.slane %v1190, 1
        %v1225 = vsel %vm721, %v1222, %v1224
        %v1227 = vsel %vm1155, %v1196, 0
        %v1229 = vsel %vm1155, %v1209, 0
        %v1231 = vsel %vm1155, %v1211, 0
        %v1233 = vsel %vm1155, %v1213, 0
        %v1235 = vsel %vm1155, %v1215, 0
        %v1237 = vsel %vm1155, %v1217, 0
        %v1239 = vsel %vm1155, %v1219, 0
        %v1241 = vsel %vm1155, %v1221, 0
        %v1243 = vsel %vm1155, %v1223, 0
        %v1245 = vsel %vm1155, %v1225, 0
        %v1247 = vsel %vm1155, %v1224, 0
        %1249 = vmatpush.xpose.msra.mxu0 0.0
        %1250 = vmatpush.xpose.msra.mxu0 0.0
        %1251 = vmatpush.xpose.msra.mxu0 0.0
        %1252 = vmatpush.xpose.msra.mxu0 0.0
        %1253 = vmatpush.xpose.msra.mxu0 0.0
        %1254 = vmatpush.xpose.msra.mxu0 0.0
        %1255 = vmatpush.xpose.msra.mxu0 %v1247
        %1256 = vmatpush.xpose.msra.mxu0 %v1245
        %1257 = vmatpush.xpose.msra.mxu0 %v1243
        %1258 = vmatpush.xpose.msra.mxu0 %v1241
        %1259 = vmatpush.xpose.msra.mxu0 %v1239
        %1260 = vmatpush.xpose.msra.mxu0 %v1237
        %1261 = vmatpush.xpose.msra.mxu0 %v1235
        %1262 = vmatpush.xpose.msra.mxu0 %v1233
        %1263 = vmatpush.xpose.msra.mxu0 %v1231
        %1264 = vmatpush.xpose.msra.mxu0 %v1229
        %1265 = vmatmul.f32.gmra.mxu0 %v1227
        %v1266 = vpop.f32.mrf.mxu0
        %v1267 = vadd.f32 0.0, %v1266
        %1268 = vdwg.mxu0
        %v1270 = vsel %vm1155, %v1194, 0
        %v1272 = vsel %vm1155, %v1181, 0
        %v1274 = vsel %vm1155, %v1182, 0
        %v1276 = vsel %vm1155, %v1183, 0
        %v1278 = vsel %vm1155, %v1184, 0
        %v1280 = vsel %vm1155, %v1185, 0
        %v1282 = vsel %vm1155, %v1186, 0
        %v1284 = vsel %vm1155, %v1187, 0
        %v1286 = vsel %vm1155, %v1188, 0
        %v1288 = vsel %vm1155, %v1189, 0
        %v1290 = vsel %vm1155, %v1190, 0
        %1292 = vmatpush.xpose.msra.mxu0 0.0
        %1293 = vmatpush.xpose.msra.mxu0 0.0
        %1294 = vmatpush.xpose.msra.mxu0 0.0
        %1295 = vmatpush.xpose.msra.mxu0 0.0
        %1296 = vmatpush.xpose.msra.mxu0 0.0
        %1297 = vmatpush.xpose.msra.mxu0 0.0
        %1298 = vmatpush.xpose.msra.mxu0 %v1290
        %1299 = vmatpush.xpose.msra.mxu0 %v1288
        %1300 = vmatpush.xpose.msra.mxu0 %v1286
        %1301 = vmatpush.xpose.msra.mxu0 %v1284
        %1302 = vmatpush.xpose.msra.mxu0 %v1282
        %1303 = vmatpush.xpose.msra.mxu0 %v1280
        %1304 = vmatpush.xpose.msra.mxu0 %v1278
        %1305 = vmatpush.xpose.msra.mxu0 %v1276
        %1306 = vmatpush.xpose.msra.mxu0 %v1274
        %1307 = vmatpush.xpose.msra.mxu0 %v1272
        %1308 = vmatmul.f32.gmra.mxu0 %v1270
        %v1309 = vpop.f32.mrf.mxu0
        %v1310 = vadd.f32 %v1267, %v1309
        %1311 = vdwg.mxu0
        %s1312 = scalar_lea.vmem %s4, 16
        %v1313 = vld [vmem:[%s1312] sm:$0xff]
        %v1314 = vrot.slane %v1181, 2
        %v1315 = vrot.slane %v1182, 2
        %v1316 = vsel %vm880, %v1314, %v1315
        %v1317 = vrot.slane %v1183, 2
        %v1318 = vsel %vm880, %v1315, %v1317
        %v1319 = vrot.slane %v1184, 2
        %v1320 = vsel %vm880, %v1317, %v1319
        %v1321 = vrot.slane %v1185, 2
        %v1322 = vsel %vm880, %v1319, %v1321
        %v1323 = vrot.slane %v1186, 2
        %v1324 = vsel %vm880, %v1321, %v1323
        %v1325 = vrot.slane %v1187, 2
        %v1326 = vsel %vm880, %v1323, %v1325
        %v1327 = vrot.slane %v1188, 2
        %v1328 = vsel %vm880, %v1325, %v1327
        %v1329 = vrot.slane %v1189, 2
        %v1330 = vsel %vm880, %v1327, %v1329
        %v1331 = vrot.slane %v1190, 2
        %v1332 = vsel %vm880, %v1329, %v1331
        %v1334 = vsel %vm1155, %v1313, 0
        %v1336 = vsel %vm1155, %v1316, 0
        %v1338 = vsel %vm1155, %v1318, 0
        %v1340 = vsel %vm1155, %v1320, 0
        %v1342 = vsel %vm1155, %v1322, 0
        %v1344 = vsel %vm1155, %v1324, 0
        %v1346 = vsel %vm1155, %v1326, 0
        %v1348 = vsel %vm1155, %v1328, 0
        %v1350 = vsel %vm1155, %v1330, 0
        %v1352 = vsel %vm1155, %v1332, 0
        %v1354 = vsel %vm1155, %v1331, 0
        %1356 = vmatpush.xpose.msra.mxu0 0.0
        %1357 = vmatpush.xpose.msra.mxu0 0.0
        %1358 = vmatpush.xpose.msra.mxu0 0.0
        %1359 = vmatpush.xpose.msra.mxu0 0.0
        %1360 = vmatpush.xpose.msra.mxu0 0.0
        %1361 = vmatpush.xpose.msra.mxu0 0.0
        %1362 = vmatpush.xpose.msra.mxu0 %v1354
        %1363 = vmatpush.xpose.msra.mxu0 %v1352
        %1364 = vmatpush.xpose.msra.mxu0 %v1350
        %1365 = vmatpush.xpose.msra.mxu0 %v1348
        %1366 = vmatpush.xpose.msra.mxu0 %v1346
        %1367 = vmatpush.xpose.msra.mxu0 %v1344
        %1368 = vmatpush.xpose.msra.mxu0 %v1342
        %1369 = vmatpush.xpose.msra.mxu0 %v1340
        %1370 = vmatpush.xpose.msra.mxu0 %v1338
        %1371 = vmatpush.xpose.msra.mxu0 %v1336
        %1372 = vmatmul.f32.gmra.mxu0 %v1334
        %v1373 = vpop.f32.mrf.mxu0
        %v1374 = vadd.f32 0.0, %v1373
        %1375 = vdwg.mxu0
        %v1376 = vadd.f32 %v1310, %v1374
        %s1377 = scalar_lea.vmem %s4, 24
        %v1378 = vld [vmem:[%s1377] sm:$0xff]
        %v1380 = vrot.slane %v1191, 2
        %v1381 = vsel %vm880, %v1331, %v1380
        %v1383 = vsel %vm1155, %v1378, 0
        %v1385 = vsel %vm1155, %v1381, 0
        %v1387 = vsel %vm1155, %v1380, 0
        %1389 = vmatpush.xpose.msra.mxu0 0.0
        %1390 = vmatpush.xpose.msra.mxu0 0.0
        %1391 = vmatpush.xpose.msra.mxu0 0.0
        %1392 = vmatpush.xpose.msra.mxu0 0.0
        %1393 = vmatpush.xpose.msra.mxu0 0.0
        %1394 = vmatpush.xpose.msra.mxu0 0.0
        %1395 = vmatpush.xpose.msra.mxu0 %v1387
        %1396 = vmatpush.xpose.msra.mxu0 %v1385
        %1397 = vmatpush.xpose.msra.mxu0 %v1352
        %1398 = vmatpush.xpose.msra.mxu0 %v1350
        %1399 = vmatpush.xpose.msra.mxu0 %v1348
        %1400 = vmatpush.xpose.msra.mxu0 %v1346
        %1401 = vmatpush.xpose.msra.mxu0 %v1344
        %1402 = vmatpush.xpose.msra.mxu0 %v1342
        %1403 = vmatpush.xpose.msra.mxu0 %v1340
        %1404 = vmatpush.xpose.msra.mxu0 %v1338
        %1405 = vmatmul.f32.gmra.mxu0 %v1383
        %v1406 = vpop.f32.mrf.mxu0
        %v1407 = vadd.f32 0.0, %v1406
        %1408 = vdwg.mxu0
        %v1409 = vadd.f32 %v1376, %v1407
        %s1410 = scalar_lea.vmem %s4, 32
        %v1411 = vld [vmem:[%s1410] sm:$0xff]
        %v1413 = vrot.slane %v1182, 3
        %v1414 = vrot.slane %v1183, 3
        %v1415 = vsel %vm981, %v1413, %v1414
        %v1416 = vrot.slane %v1184, 3
        %v1417 = vsel %vm981, %v1414, %v1416
        %v1418 = vrot.slane %v1185, 3
        %v1419 = vsel %vm981, %v1416, %v1418
        %v1420 = vrot.slane %v1186, 3
        %v1421 = vsel %vm981, %v1418, %v1420
        %v1422 = vrot.slane %v1187, 3
        %v1423 = vsel %vm981, %v1420, %v1422
        %v1424 = vrot.slane %v1188, 3
        %v1425 = vsel %vm981, %v1422, %v1424
        %v1426 = vrot.slane %v1189, 3
        %v1427 = vsel %vm981, %v1424, %v1426
        %v1428 = vrot.slane %v1190, 3
        %v1429 = vsel %vm981, %v1426, %v1428
        %v1430 = vrot.slane %v1191, 3
        %v1431 = vsel %vm981, %v1428, %v1430
        %v1432 = vrot.slane %v1192, 3
        %v1433 = vsel %vm981, %v1430, %v1432
        %v1435 = vsel %vm1155, %v1411, 0
        %v1437 = vsel %vm1155, %v1415, 0
        %v1439 = vsel %vm1155, %v1417, 0
        %v1441 = vsel %vm1155, %v1419, 0
        %v1443 = vsel %vm1155, %v1421, 0
        %v1445 = vsel %vm1155, %v1423, 0
        %v1447 = vsel %vm1155, %v1425, 0
        %v1449 = vsel %vm1155, %v1427, 0
        %v1451 = vsel %vm1155, %v1429, 0
        %v1453 = vsel %vm1155, %v1431, 0
        %v1455 = vsel %vm1155, %v1433, 0
        %1457 = vmatpush.xpose.msra.mxu0 0.0
        %1458 = vmatpush.xpose.msra.mxu0 0.0
        %1459 = vmatpush.xpose.msra.mxu0 0.0
        %1460 = vmatpush.xpose.msra.mxu0 0.0
        %1461 = vmatpush.xpose.msra.mxu0 0.0
        %1462 = vmatpush.xpose.msra.mxu0 0.0
        %1463 = vmatpush.xpose.msra.mxu0 %v1455
        %1464 = vmatpush.xpose.msra.mxu0 %v1453
        %1465 = vmatpush.xpose.msra.mxu0 %v1451
        %1466 = vmatpush.xpose.msra.mxu0 %v1449
        %1467 = vmatpush.xpose.msra.mxu0 %v1447
        %1468 = vmatpush.xpose.msra.mxu0 %v1445
        %1469 = vmatpush.xpose.msra.mxu0 %v1443
        %1470 = vmatpush.xpose.msra.mxu0 %v1441
        %1471 = vmatpush.xpose.msra.mxu0 %v1439
        %1472 = vmatpush.xpose.msra.mxu0 %v1437
        %1473 = vmatmul.f32.gmra.mxu0 %v1435
        %v1474 = vpop.f32.mrf.mxu0
        %v1475 = vadd.f32 0.0, %v1474
        %1476 = vdwg.mxu0
        %v1477 = vadd.f32 %v1409, %v1475
        %s1478 = scalar_lea.vmem %s4, 40
        %v1479 = vld [vmem:[%s1478] sm:$0xff]
        %vm1480 = vcmask 1043456
        %v1481 = vrot.slane %v1182, 4
        %v1482 = vrot.slane %v1183, 4
        %v1483 = vsel %vm1480, %v1481, %v1482
        %v1484 = vrot.slane %v1184, 4
        %v1485 = vsel %vm1480, %v1482, %v1484
        %v1486 = vrot.slane %v1185, 4
        %v1487 = vsel %vm1480, %v1484, %v1486
        %v1488 = vrot.slane %v1186, 4
        %v1489 = vsel %vm1480, %v1486, %v1488
        %v1490 = vrot.slane %v1187, 4
        %v1491 = vsel %vm1480, %v1488, %v1490
        %v1492 = vrot.slane %v1188, 4
        %v1493 = vsel %vm1480, %v1490, %v1492
        %v1494 = vrot.slane %v1189, 4
        %v1495 = vsel %vm1480, %v1492, %v1494
        %v1496 = vrot.slane %v1190, 4
        %v1497 = vsel %vm1480, %v1494, %v1496
        %v1498 = vrot.slane %v1191, 4
        %v1499 = vsel %vm1480, %v1496, %v1498
        %v1500 = vrot.slane %v1192, 4
        %v1501 = vsel %vm1480, %v1498, %v1500
        %v1503 = vsel %vm1155, %v1479, 0
        %v1505 = vsel %vm1155, %v1483, 0
        %v1507 = vsel %vm1155, %v1485, 0
        %v1509 = vsel %vm1155, %v1487, 0
        %v1511 = vsel %vm1155, %v1489, 0
        %v1513 = vsel %vm1155, %v1491, 0
        %v1515 = vsel %vm1155, %v1493, 0
        %v1517 = vsel %vm1155, %v1495, 0
        %v1519 = vsel %vm1155, %v1497, 0
        %v1521 = vsel %vm1155, %v1499, 0
        %v1523 = vsel %vm1155, %v1501, 0
        %1525 = vmatpush.xpose.msra.mxu0 0.0
        %1526 = vmatpush.xpose.msra.mxu0 0.0
        %1527 = vmatpush.xpose.msra.mxu0 0.0
        %1528 = vmatpush.xpose.msra.mxu0 0.0
        %1529 = vmatpush.xpose.msra.mxu0 0.0
        %1530 = vmatpush.xpose.msra.mxu0 0.0
        %1531 = vmatpush.xpose.msra.mxu0 %v1523
        %1532 = vmatpush.xpose.msra.mxu0 %v1521
        %1533 = vmatpush.xpose.msra.mxu0 %v1519
        %1534 = vmatpush.xpose.msra.mxu0 %v1517
        %1535 = vmatpush.xpose.msra.mxu0 %v1515
        %1536 = vmatpush.xpose.msra.mxu0 %v1513
        %1537 = vmatpush.xpose.msra.mxu0 %v1511
        %1538 = vmatpush.xpose.msra.mxu0 %v1509
        %1539 = vmatpush.xpose.msra.mxu0 %v1507
        %1540 = vmatpush.xpose.msra.mxu0 %v1505
        %1541 = vmatmul.f32.gmra.mxu0 %v1503
        %v1542 = vpop.f32.mrf.mxu0
        %v1543 = vadd.f32 0.0, %v1542
        %1544 = vdwg.mxu0
        %v1545 = vadd.f32 %v1477, %v1543
        %s1546 = scalar_lea.vmem %s4, 48
        %v1547 = vld [vmem:[%s1546] sm:$0xff]
        %v1549 = vrot.slane %v1193, 4
        %v1550 = vsel %vm1480, %v1500, %v1549
        %v1552 = vsel %vm1155, %v1547, 0
        %v1554 = vsel %vm1155, %v1550, 0
        %1556 = vmatpush.xpose.msra.mxu0 0.0
        %1557 = vmatpush.xpose.msra.mxu0 0.0
        %1558 = vmatpush.xpose.msra.mxu0 0.0
        %1559 = vmatpush.xpose.msra.mxu0 0.0
        %1560 = vmatpush.xpose.msra.mxu0 0.0
        %1561 = vmatpush.xpose.msra.mxu0 0.0
        %1562 = vmatpush.xpose.msra.mxu0 %v1554
        %1563 = vmatpush.xpose.msra.mxu0 %v1523
        %1564 = vmatpush.xpose.msra.mxu0 %v1521
        %1565 = vmatpush.xpose.msra.mxu0 %v1519
        %1566 = vmatpush.xpose.msra.mxu0 %v1517
        %1567 = vmatpush.xpose.msra.mxu0 %v1515
        %1568 = vmatpush.xpose.msra.mxu0 %v1513
        %1569 = vmatpush.xpose.msra.mxu0 %v1511
        %1570 = vmatpush.xpose.msra.mxu0 %v1509
        %1571 = vmatpush.xpose.msra.mxu0 %v1507
        %1572 = vmatmul.f32.gmra.mxu0 %v1552
        %v1573 = vpop.f32.mrf.mxu0
        %v1574 = vadd.f32 0.0, %v1573
        %1575 = vdwg.mxu0
        %v1576 = vadd.f32 %v1545, %v1574
        %s1577 = scalar_lea.vmem %s4, 56
        %v1578 = vld [vmem:[%s1577] sm:$0xff]
        %vm1579 = vcmask 1042432
        %v1580 = vrot.slane %v1183, 5
        %v1581 = vrot.slane %v1184, 5
        %v1582 = vsel %vm1579, %v1580, %v1581
        %v1583 = vrot.slane %v1185, 5
        %v1584 = vsel %vm1579, %v1581, %v1583
        %v1585 = vrot.slane %v1186, 5
        %v1586 = vsel %vm1579, %v1583, %v1585
        %v1587 = vrot.slane %v1187, 5
        %v1588 = vsel %vm1579, %v1585, %v1587
        %v1589 = vrot.slane %v1188, 5
        %v1590 = vsel %vm1579, %v1587, %v1589
        %v1591 = vrot.slane %v1189, 5
        %v1592 = vsel %vm1579, %v1589, %v1591
        %v1593 = vrot.slane %v1190, 5
        %v1594 = vsel %vm1579, %v1591, %v1593
        %v1595 = vrot.slane %v1191, 5
        %v1596 = vsel %vm1579, %v1593, %v1595
        %v1597 = vrot.slane %v1192, 5
        %v1598 = vsel %vm1579, %v1595, %v1597
        %v1599 = vrot.slane %v1193, 5
        %v1600 = vsel %vm1579, %v1597, %v1599
        %v1602 = vsel %vm1155, %v1578, 0
        %v1604 = vsel %vm1155, %v1582, 0
        %v1606 = vsel %vm1155, %v1584, 0
        %v1608 = vsel %vm1155, %v1586, 0
        %v1610 = vsel %vm1155, %v1588, 0
        %v1612 = vsel %vm1155, %v1590, 0
        %v1614 = vsel %vm1155, %v1592, 0
        %v1616 = vsel %vm1155, %v1594, 0
        %v1618 = vsel %vm1155, %v1596, 0
        %v1620 = vsel %vm1155, %v1598, 0
        %v1622 = vsel %vm1155, %v1600, 0
        %1624 = vmatpush.xpose.msra.mxu0 0.0
        %1625 = vmatpush.xpose.msra.mxu0 0.0
        %1626 = vmatpush.xpose.msra.mxu0 0.0
        %1627 = vmatpush.xpose.msra.mxu0 0.0
        %1628 = vmatpush.xpose.msra.mxu0 0.0
        %1629 = vmatpush.xpose.msra.mxu0 0.0
        %1630 = vmatpush.xpose.msra.mxu0 %v1622
        %1631 = vmatpush.xpose.msra.mxu0 %v1620
        %1632 = vmatpush.xpose.msra.mxu0 %v1618
        %1633 = vmatpush.xpose.msra.mxu0 %v1616
        %1634 = vmatpush.xpose.msra.mxu0 %v1614
        %1635 = vmatpush.xpose.msra.mxu0 %v1612
        %1636 = vmatpush.xpose.msra.mxu0 %v1610
        %1637 = vmatpush.xpose.msra.mxu0 %v1608
        %1638 = vmatpush.xpose.msra.mxu0 %v1606
        %1639 = vmatpush.xpose.msra.mxu0 %v1604
        %1640 = vmatmul.f32.gmra.mxu0 %v1602
        %v1641 = vpop.f32.mrf.mxu0
        %v1642 = vadd.f32 0.0, %v1641
        %1643 = vdwg.mxu0
        %v1644 = vadd.f32 %v1576, %v1642
        %s1645 = scalar_lea.vmem %s4, 64
        %v1646 = vld [vmem:[%s1645] sm:$0xff]
        %vm1647 = vcmask 1041408
        %v1648 = vrot.slane %v1183, 6
        %v1649 = vrot.slane %v1184, 6
        %v1650 = vsel %vm1647, %v1648, %v1649
        %v1651 = vrot.slane %v1185, 6
        %v1652 = vsel %vm1647, %v1649, %v1651
        %v1653 = vrot.slane %v1186, 6
        %v1654 = vsel %vm1647, %v1651, %v1653
        %v1655 = vrot.slane %v1187, 6
        %v1656 = vsel %vm1647, %v1653, %v1655
        %v1657 = vrot.slane %v1188, 6
        %v1658 = vsel %vm1647, %v1655, %v1657
        %v1659 = vrot.slane %v1189, 6
        %v1660 = vsel %vm1647, %v1657, %v1659
        %v1661 = vrot.slane %v1190, 6
        %v1662 = vsel %vm1647, %v1659, %v1661
        %v1663 = vrot.slane %v1191, 6
        %v1664 = vsel %vm1647, %v1661, %v1663
        %v1665 = vrot.slane %v1192, 6
        %v1666 = vsel %vm1647, %v1663, %v1665
        %v1667 = vrot.slane %v1193, 6
        %v1668 = vsel %vm1647, %v1665, %v1667
        %v1670 = vsel %vm1155, %v1646, 0
        %v1672 = vsel %vm1155, %v1650, 0
        %v1674 = vsel %vm1155, %v1652, 0
        %v1676 = vsel %vm1155, %v1654, 0
        %v1678 = vsel %vm1155, %v1656, 0
        %v1680 = vsel %vm1155, %v1658, 0
        %v1682 = vsel %vm1155, %v1660, 0
        %v1684 = vsel %vm1155, %v1662, 0
        %v1686 = vsel %vm1155, %v1664, 0
        %v1688 = vsel %vm1155, %v1666, 0
        %v1690 = vsel %vm1155, %v1668, 0
        %1692 = vmatpush.xpose.msra.mxu0 0.0
        %1693 = vmatpush.xpose.msra.mxu0 0.0
        %1694 = vmatpush.xpose.msra.mxu0 0.0
        %1695 = vmatpush.xpose.msra.mxu0 0.0
        %1696 = vmatpush.xpose.msra.mxu0 0.0
        %1697 = vmatpush.xpose.msra.mxu0 0.0
        %1698 = vmatpush.xpose.msra.mxu0 %v1690
        %1699 = vmatpush.xpose.msra.mxu0 %v1688
        %1700 = vmatpush.xpose.msra.mxu0 %v1686
        %1701 = vmatpush.xpose.msra.mxu0 %v1684
        %1702 = vmatpush.xpose.msra.mxu0 %v1682
        %1703 = vmatpush.xpose.msra.mxu0 %v1680
        %1704 = vmatpush.xpose.msra.mxu0 %v1678
        %1705 = vmatpush.xpose.msra.mxu0 %v1676
        %1706 = vmatpush.xpose.msra.mxu0 %v1674
        %1707 = vmatpush.xpose.msra.mxu0 %v1672
        %1708 = vmatmul.f32.gmra.mxu0 %v1670
        %v1709 = vpop.f32.mrf.mxu0
        %v1710 = vadd.f32 0.0, %v1709
        %1711 = vdwg.mxu0
        %v1712 = vadd.f32 %v1644, %v1710
        %vm1713 = vcmask 818176
        %1714 = vst.msk [vmem:[%s258] sm:$0xff] %vm1713, 0.0
        %v1715 = vld [vmem:[%s5] sm:$0xff]
        %1717 = vset.pattern.permute.xlu0 0
        %1718 = vperm.xlu0 %1717, %v1715
        %v1719 = vpop.permute.xlu0 %1718
        %v1721 = vadd.f32 %v1712, %v1719
        %1723 = vrot.lane.b32.xlu0 %v1721, 11
        %v1724 = vpop.permute.xlu0 %1723
        %vm1726 = vcmask 728152
        %1727 = vst.msk [vmem:[%s258] sm:$0xff] %vm1726, %v1724
        %s1728 = sand.u32 %s160, 1
        %s1729 = scalar_lea.sflag [#allocation4], %s1728
        %s1730 = sand.u32 %s160, 1
        %s1731 = smul.addr %s1730, 8
        %s1732 = scalar_lea.vmem [#allocation6], %s1731
        // Predicated region
        $region49: #{tpu_custom_call.1} parent=43 // pred_check
          %p1733 = pneg %p170
        $region50: #{tpu_custom_call.1} parent=43 // pred_check_branch
          %1735 = sbr.rel (%p1733) target = $region52
        $region51: #{tpu_custom_call.1} parent=43 // pred_region
          %1737 = vsyncadd %s1729, 0
          %s1738 = smul.addr %s21, 8
          %s1739 = scalar_lea.hbm %s6, %s1738
          %s1741 = sshll.u32 %s1732, 4
          %s1742 = int_to_ptr.vmem [resolvable:$true] %s1741
          %s1743 = sshll.u32 %s1739, 4
          %s1744 = int_to_ptr.hbm [resolvable:$true] %s1743
          %1746 = dma.vmem_to_hbm [thread:$0]  %s1742, 128, %s1744, %s1729
        $region52: #{tpu_custom_call.1} parent=43 // pred_fallthru
          _
      $region44: #{tpu_custom_call.1} parent=5 // pred_fallthru
        _
      %p1747 = scmp.le.s32.totalorder 2, %s16
      // Predicated region
      $region53: #{tpu_custom_call.1} parent=5 // pred_check
        %p1748 = pneg %p1747
      $region54: #{tpu_custom_call.1} parent=5 // pred_check_branch
        %1750 = sbr.rel (%p1748) target = $region56
      $region55: #{tpu_custom_call.1} parent=5 // pred_region
        %s1751 = ssub.s32 %s16, 2
        // Predicated region
        $region57: #{tpu_custom_call.1} parent=55 // pred_check
          %p1752 = pneg %p176
        $region58: #{tpu_custom_call.1} parent=55 // pred_check_branch
          %1754 = sbr.rel (%p1752) target = $region60
        $region59: #{tpu_custom_call.1} parent=55 // pred_region
          %s1755 = sand.u32 %s161, 1
          %s1756 = scalar_lea.sflag [#allocation4], %s1755
          %s1757 = sand.u32 %s161, 1
          %s1758 = smul.addr %s1757, 8
          %s1759 = scalar_lea.vmem [#allocation6], %s1758
          %1761 = dma.done %s1756, 128
        $region60: #{tpu_custom_call.1} parent=55 // pred_fallthru
          _
      $region56: #{tpu_custom_call.1} parent=5 // pred_fallthru
        _
    $region6: #{tpu_custom_call.1} parent=1 // loop_footer
      %s20 = sadd.s32 1, %s16
    $region7: #{tpu_custom_call.1} parent=1 // loop_footer_branch
      %15 = sbr.rel target = $region3
    $region8: #{tpu_custom_call.1} parent=1 // loop_exit
      _
    %1762 = vsyncpa [#allocation4], 1
    %s1763 = scalar_lea.sflag [#allocation4], 1
    %1764 = vsyncpa %s1763, 1
    %1765 = vsyncpa [#allocation5], 1
    %s1766 = scalar_lea.sflag [#allocation5], 1
    %1767 = vsyncpa %s1766, 1

</llo_original>
